<compile_context>
chip_gen: v7x
topology: tpu7x:2x2x1
jax: 0.10.0
libtpu: 0.0.40
codegen_flags: <defaults>
</compile_context>

<pallas_src>
import functools

import jax
import jax.numpy as jnp
import numpy as np
from jax import lax
from jax.experimental import pallas as pl
from jax.experimental.pallas import tpu as pltpu

BN_EPS = 1e-5

LAYER_ORDER = ("1", "2", "3", "4", "4_1", "5", "6")
LAYER_ACTS = ("relu", "relu", "relu", "relu", "relu", "relu", "sigmoid")


def _conv_bn_act(h, w3, b, gamma, beta, act):
    """One fused Conv1d(k=3, pad=1) + BatchNorm1d(batch stats) + activation.

    h     : (C_in, L)      f32 activation, L lane-aligned (multiple of 128)
    w3    : (C_out, 3*C_in) conv weights, taps stacked k-major [k=0 | k=1 | k=2]
    b, gamma, beta : (C_out, 1)
    returns (C_out, L)
    """
    C_in, L = h.shape
    lane = lax.broadcasted_iota(jnp.int32, (C_in, L), 1)
    # Zero-padded shifts: XLU lane rotations + masking of the wrapped column.
    left = jnp.where(lane == 0, 0.0, pltpu.roll(h, shift=1, axis=1))           # x[l-1]
    right = jnp.where(lane == L - 1, 0.0, pltpu.roll(h, shift=L - 1, axis=1))  # x[l+1]
    x3 = jnp.concatenate([left, h, right], axis=0)                             # (3*C_in, L)

    # Single small matmul per layer (3 taps collapsed into one contraction).
    y = jnp.dot(w3, x3, preferred_element_type=jnp.float32) + b                # (C_out, L)

    # BatchNorm1d with track_running_stats=False and batch size 1:
    # per-channel biased variance over L.
    mean = jnp.mean(y, axis=1, keepdims=True)
    var = jnp.mean(jnp.square(y - mean), axis=1, keepdims=True)
    y = (y - mean) * lax.rsqrt(var + BN_EPS)
    y = y * gamma + beta

    if act == "relu":
        return jnp.maximum(y, 0.0)
    return jax.nn.sigmoid(y)


def fused_cnn_kernel(*refs, acts):
    """Whole 7-layer chain in one kernel; intermediates stay in VMEM/vregs."""
    x_ref = refs[0]
    out_ref = refs[-1]
    param_refs = refs[1:-1]
    h = x_ref[...]                                       # (1, L)
    for i, act in enumerate(acts):
        w_ref, b_ref, g_ref, be_ref = param_refs[4 * i: 4 * i + 4]
        h = _conv_bn_act(h, w_ref[...], b_ref[...], g_ref[...], be_ref[...], act)
    out_ref[...] = h.astype(out_ref.dtype)               # (T, L) — lane-dense store


def cnn_nodes_forward(x, prepped):
    """x: (N,) node features; prepped: flat tuple of kernel-layout parameters.

    Returns (N, T), matching the torch module's output.
    """
    N = x.shape[0]
    # Lane alignment: keep N a multiple of 128 so every layer is unmasked,
    # lane-dense vreg work (correctness would hold for other N, perf would not).
    assert N % 128 == 0, "node count must be a multiple of 128 lanes"
    T = prepped[-4].shape[0]                             # C_out of the last layer
    x2d = x.reshape(1, N)

    vmem = pl.BlockSpec(memory_space=pltpu.MemorySpace.VMEM)
    kernel = functools.partial(fused_cnn_kernel, acts=LAYER_ACTS)
    out = pl.pallas_call(
        kernel,
        out_shape=jax.ShapeDtypeStruct((T, N), jnp.float32),
        in_specs=[vmem] * (1 + len(prepped)),
        out_specs=vmem,
    )(x2d, *prepped)
    return out.T                                         # (T,N) -> (N,T), outside kernel


def make_params(key, T):
    """Deterministic raw conv / BN parameters for the 7 live layers.

    conv_0 / batch_norm_0 / relu_0 in the torch module is dead code (its
    output is never consumed), so it is dropped here entirely.
    """
    c4 = int(np.ceil(T / 4))
    c2 = int(np.ceil(T / 2))
    layer_io = {
        "1": (1, c4), "2": (c4, c4), "3": (c4, c2), "4": (c2, c2),
        "4_1": (c2, c2), "5": (c2, T), "6": (T, T),
    }
    params = {}
    for name in LAYER_ORDER:
        cin, cout = layer_io[name]
        key, kw, kb = jax.random.split(key, 3)
        bound = 1.0 / np.sqrt(cin * 3)                   # PyTorch Conv1d default init
        w = jax.random.uniform(kw, (cout, cin, 3), jnp.float32, -bound, bound)
        b = jax.random.uniform(kb, (cout,), jnp.float32, -bound, bound)
        gamma = jnp.ones((cout,), jnp.float32)           # BatchNorm1d default affine
        beta = jnp.zeros((cout,), jnp.float32)
        params[name] = (w, b, gamma, beta)
    return params


def prep_params(params):
    """One-time parameter re-layout for the kernel (done outside the forward):
    w (C_out, C_in, 3) -> (C_out, 3*C_in) with taps stacked k-major;
    b/gamma/beta -> (C_out, 1)."""
    flat = []
    for name in LAYER_ORDER:
        w, b, gamma, beta = params[name]
        cout, cin, _ = w.shape
        w3 = jnp.transpose(w, (0, 2, 1)).reshape(cout, 3 * cin)
        flat.extend([w3, b.reshape(cout, 1),
                     gamma.reshape(cout, 1), beta.reshape(cout, 1)])
    return tuple(flat)


# ---------------- pure-JAX reference (for correctness check) ----------------
def _ref_layer(h, p, act):
    w, b, g, be = p
    y = lax.conv_general_dilated(
        h[None], w, window_strides=(1,), padding=[(1, 1)],
        dimension_numbers=("NCH", "OIH", "NCH"))[0] + b[:, None]
    m = y.mean(axis=1, keepdims=True)
    v = ((y - m) ** 2).mean(axis=1, keepdims=True)
    y = (y - m) / jnp.sqrt(v + BN_EPS) * g[:, None] + be[:, None]
    return jnp.maximum(y, 0.0) if act == "relu" else jax.nn.sigmoid(y)


def ref_forward(x, params):
    h = x.reshape(1, -1)
    for name, act in zip(LAYER_ORDER, LAYER_ACTS):
        h = _ref_layer(h, params[name], act)
    return h.T


if __name__ == "__main__":
    T = 8          # model hyperparameter
    N = 128        # number of nodes (length of the input feature vector)

    key = jax.random.PRNGKey(0)
    kx, kp = jax.random.split(key)
    x = jax.random.normal(kx, (N,), jnp.float32)
    params = make_params(kp, T)
    prepped = prep_params(params)          # one-time layout prep, outside jit

    fwd = jax.jit(cnn_nodes_forward)
    out = jax.block_until_ready(fwd(x, prepped))
    assert out.shape == (N, T), out.shape

    ref = ref_forward(x, params)
    np.testing.assert_allclose(np.asarray(out), np.asarray(ref), rtol=1e-5, atol=1e-5)

    print("KERNEL_OK")
</pallas_src>

<mosaic_0001>
module attributes {stable_mosaic.version = 11 : i64} {
  func.func @fused_cnn_kernel(%arg0: memref<1x128xf32, #tpu.memory_space<vmem>>, %arg1: memref<2x3xf32, #tpu.memory_space<vmem>>, %arg2: memref<2x1xf32, #tpu.memory_space<vmem>>, %arg3: memref<2x1xf32, #tpu.memory_space<vmem>>, %arg4: memref<2x1xf32, #tpu.memory_space<vmem>>, %arg5: memref<2x6xf32, #tpu.memory_space<vmem>>, %arg6: memref<2x1xf32, #tpu.memory_space<vmem>>, %arg7: memref<2x1xf32, #tpu.memory_space<vmem>>, %arg8: memref<2x1xf32, #tpu.memory_space<vmem>>, %arg9: memref<4x6xf32, #tpu.memory_space<vmem>>, %arg10: memref<4x1xf32, #tpu.memory_space<vmem>>, %arg11: memref<4x1xf32, #tpu.memory_space<vmem>>, %arg12: memref<4x1xf32, #tpu.memory_space<vmem>>, %arg13: memref<4x12xf32, #tpu.memory_space<vmem>>, %arg14: memref<4x1xf32, #tpu.memory_space<vmem>>, %arg15: memref<4x1xf32, #tpu.memory_space<vmem>>, %arg16: memref<4x1xf32, #tpu.memory_space<vmem>>, %arg17: memref<4x12xf32, #tpu.memory_space<vmem>>, %arg18: memref<4x1xf32, #tpu.memory_space<vmem>>, %arg19: memref<4x1xf32, #tpu.memory_space<vmem>>, %arg20: memref<4x1xf32, #tpu.memory_space<vmem>>, %arg21: memref<8x12xf32, #tpu.memory_space<vmem>>, %arg22: memref<8x1xf32, #tpu.memory_space<vmem>>, %arg23: memref<8x1xf32, #tpu.memory_space<vmem>>, %arg24: memref<8x1xf32, #tpu.memory_space<vmem>>, %arg25: memref<8x24xf32, #tpu.memory_space<vmem>>, %arg26: memref<8x1xf32, #tpu.memory_space<vmem>>, %arg27: memref<8x1xf32, #tpu.memory_space<vmem>>, %arg28: memref<8x1xf32, #tpu.memory_space<vmem>>, %arg29: memref<8x128xf32, #tpu.memory_space<vmem>>) attributes {dimension_semantics = [], scalar_prefetch = 0 : i64, scratch_operands = 0 : i64, tpu.core_type = #tpu.core_type<tc>} {
    %c0 = arith.constant 0 : index
    %c0_0 = arith.constant 0 : index
    %0 = vector.load %arg0[%c0, %c0_0] : memref<1x128xf32, #tpu.memory_space<vmem>>, vector<1x128xf32>
    %c0_1 = arith.constant 0 : index
    %c0_2 = arith.constant 0 : index
    %1 = vector.load %arg1[%c0_1, %c0_2] : memref<2x3xf32, #tpu.memory_space<vmem>>, vector<2x3xf32>
    %c0_3 = arith.constant 0 : index
    %c0_4 = arith.constant 0 : index
    %2 = vector.load %arg2[%c0_3, %c0_4] : memref<2x1xf32, #tpu.memory_space<vmem>>, vector<2x1xf32>
    %c0_5 = arith.constant 0 : index
    %c0_6 = arith.constant 0 : index
    %3 = vector.load %arg3[%c0_5, %c0_6] : memref<2x1xf32, #tpu.memory_space<vmem>>, vector<2x1xf32>
    %c0_7 = arith.constant 0 : index
    %c0_8 = arith.constant 0 : index
    %4 = vector.load %arg4[%c0_7, %c0_8] : memref<2x1xf32, #tpu.memory_space<vmem>>, vector<2x1xf32>
    %5 = tpu.iota {dimensions = array<i32: 1>} : vector<1x128xi32>
    %c0_i32 = arith.constant 0 : i32
    %6 = vector.broadcast %c0_i32 : i32 to vector<1x128xi32>
    %7 = arith.cmpi eq, %5, %6 : vector<1x128xi32>
    %c1_i32 = arith.constant 1 : i32
    %8 = tpu.dynamic_rotate %0 by %c1_i32 dim 1 : vector<1x128xf32>, i32 -> vector<1x128xf32>
    %cst = arith.constant 0.000000e+00 : f32
    %9 = vector.broadcast %cst : f32 to vector<1x128xf32>
    %10 = arith.select %7, %9, %8 : vector<1x128xi1>, vector<1x128xf32>
    %c127_i32 = arith.constant 127 : i32
    %11 = vector.broadcast %c127_i32 : i32 to vector<1x128xi32>
    %12 = arith.cmpi eq, %5, %11 : vector<1x128xi32>
    %c127_i32_9 = arith.constant 127 : i32
    %13 = tpu.dynamic_rotate %0 by %c127_i32_9 dim 1 : vector<1x128xf32>, i32 -> vector<1x128xf32>
    %cst_10 = arith.constant 0.000000e+00 : f32
    %14 = vector.broadcast %cst_10 : f32 to vector<1x128xf32>
    %15 = arith.select %12, %14, %13 : vector<1x128xi1>, vector<1x128xf32>
    %16 = tpu.concatenate %10, %0, %15 in 0 : vector<1x128xf32>, vector<1x128xf32>, vector<1x128xf32> -> vector<3x128xf32>
    %cst_11 = arith.constant dense<0.000000e+00> : vector<2x128xf32>
    %17 = tpu.matmul %1, %16, %cst_11 {dimension_numbers = #tpu.dot_dimension_numbers<[1], [0], [0], [1], [0, 0, 1, 1], [], []>} : vector<2x3xf32>, vector<3x128xf32>, vector<2x128xf32> -> vector<2x128xf32>
    %18 = vector.broadcast %2 : vector<2x1xf32> to vector<2x128xf32>
    %19 = arith.addf %17, %18 : vector<2x128xf32>
    %cst_12 = arith.constant dense<0.000000e+00> : vector<2xf32>
    %20 = vector.multi_reduction <add>, %19, %cst_12 [1] : vector<2x128xf32> to vector<2xf32>
    %21 = vector.shape_cast %20 : vector<2xf32> to vector<2x1xf32>
    %cst_13 = arith.constant 1.280000e+02 : f32
    %22 = vector.broadcast %cst_13 : f32 to vector<2x1xf32>
    %23 = arith.divf %21, %22 : vector<2x1xf32>
    %24 = vector.broadcast %23 : vector<2x1xf32> to vector<2x128xf32>
    %25 = arith.subf %19, %24 : vector<2x128xf32>
    %26 = arith.mulf %25, %25 : vector<2x128xf32>
    %cst_14 = arith.constant dense<0.000000e+00> : vector<2xf32>
    %27 = vector.multi_reduction <add>, %26, %cst_14 [1] : vector<2x128xf32> to vector<2xf32>
    %28 = vector.shape_cast %27 : vector<2xf32> to vector<2x1xf32>
    %cst_15 = arith.constant 1.280000e+02 : f32
    %29 = vector.broadcast %cst_15 : f32 to vector<2x1xf32>
    %30 = arith.divf %28, %29 : vector<2x1xf32>
    %31 = vector.broadcast %23 : vector<2x1xf32> to vector<2x128xf32>
    %32 = arith.subf %19, %31 : vector<2x128xf32>
    %cst_16 = arith.constant 9.99999974E-6 : f32
    %33 = vector.broadcast %cst_16 : f32 to vector<2x1xf32>
    %34 = arith.addf %30, %33 : vector<2x1xf32>
    %35 = math.rsqrt %34 : vector<2x1xf32>
    %36 = vector.broadcast %35 : vector<2x1xf32> to vector<2x128xf32>
    %37 = arith.mulf %32, %36 : vector<2x128xf32>
    %38 = vector.broadcast %3 : vector<2x1xf32> to vector<2x128xf32>
    %39 = arith.mulf %37, %38 : vector<2x128xf32>
    %40 = vector.broadcast %4 : vector<2x1xf32> to vector<2x128xf32>
    %41 = arith.addf %39, %40 : vector<2x128xf32>
    %cst_17 = arith.constant 0.000000e+00 : f32
    %42 = vector.broadcast %cst_17 : f32 to vector<2x128xf32>
    %43 = arith.maximumf %41, %42 : vector<2x128xf32>
    %c0_18 = arith.constant 0 : index
    %c0_19 = arith.constant 0 : index
    %44 = vector.load %arg5[%c0_18, %c0_19] : memref<2x6xf32, #tpu.memory_space<vmem>>, vector<2x6xf32>
    %c0_20 = arith.constant 0 : index
    %c0_21 = arith.constant 0 : index
    %45 = vector.load %arg6[%c0_20, %c0_21] : memref<2x1xf32, #tpu.memory_space<vmem>>, vector<2x1xf32>
    %c0_22 = arith.constant 0 : index
    %c0_23 = arith.constant 0 : index
    %46 = vector.load %arg7[%c0_22, %c0_23] : memref<2x1xf32, #tpu.memory_space<vmem>>, vector<2x1xf32>
    %c0_24 = arith.constant 0 : index
    %c0_25 = arith.constant 0 : index
    %47 = vector.load %arg8[%c0_24, %c0_25] : memref<2x1xf32, #tpu.memory_space<vmem>>, vector<2x1xf32>
    %48 = tpu.iota {dimensions = array<i32: 1>} : vector<2x128xi32>
    %c0_i32_26 = arith.constant 0 : i32
    %49 = vector.broadcast %c0_i32_26 : i32 to vector<2x128xi32>
    %50 = arith.cmpi eq, %48, %49 : vector<2x128xi32>
    %c1_i32_27 = arith.constant 1 : i32
    %51 = tpu.dynamic_rotate %43 by %c1_i32_27 dim 1 : vector<2x128xf32>, i32 -> vector<2x128xf32>
    %cst_28 = arith.constant 0.000000e+00 : f32
    %52 = vector.broadcast %cst_28 : f32 to vector<2x128xf32>
    %53 = arith.select %50, %52, %51 : vector<2x128xi1>, vector<2x128xf32>
    %c127_i32_29 = arith.constant 127 : i32
    %54 = vector.broadcast %c127_i32_29 : i32 to vector<2x128xi32>
    %55 = arith.cmpi eq, %48, %54 : vector<2x128xi32>
    %c127_i32_30 = arith.constant 127 : i32
    %56 = tpu.dynamic_rotate %43 by %c127_i32_30 dim 1 : vector<2x128xf32>, i32 -> vector<2x128xf32>
    %cst_31 = arith.constant 0.000000e+00 : f32
    %57 = vector.broadcast %cst_31 : f32 to vector<2x128xf32>
    %58 = arith.select %55, %57, %56 : vector<2x128xi1>, vector<2x128xf32>
    %59 = tpu.concatenate %53, %43, %58 in 0 : vector<2x128xf32>, vector<2x128xf32>, vector<2x128xf32> -> vector<6x128xf32>
    %cst_32 = arith.constant dense<0.000000e+00> : vector<2x128xf32>
    %60 = tpu.matmul %44, %59, %cst_32 {dimension_numbers = #tpu.dot_dimension_numbers<[1], [0], [0], [1], [0, 0, 1, 1], [], []>} : vector<2x6xf32>, vector<6x128xf32>, vector<2x128xf32> -> vector<2x128xf32>
    %61 = vector.broadcast %45 : vector<2x1xf32> to vector<2x128xf32>
    %62 = arith.addf %60, %61 : vector<2x128xf32>
    %cst_33 = arith.constant dense<0.000000e+00> : vector<2xf32>
    %63 = vector.multi_reduction <add>, %62, %cst_33 [1] : vector<2x128xf32> to vector<2xf32>
    %64 = vector.shape_cast %63 : vector<2xf32> to vector<2x1xf32>
    %cst_34 = arith.constant 1.280000e+02 : f32
    %65 = vector.broadcast %cst_34 : f32 to vector<2x1xf32>
    %66 = arith.divf %64, %65 : vector<2x1xf32>
    %67 = vector.broadcast %66 : vector<2x1xf32> to vector<2x128xf32>
    %68 = arith.subf %62, %67 : vector<2x128xf32>
    %69 = arith.mulf %68, %68 : vector<2x128xf32>
    %cst_35 = arith.constant dense<0.000000e+00> : vector<2xf32>
    %70 = vector.multi_reduction <add>, %69, %cst_35 [1] : vector<2x128xf32> to vector<2xf32>
    %71 = vector.shape_cast %70 : vector<2xf32> to vector<2x1xf32>
    %cst_36 = arith.constant 1.280000e+02 : f32
    %72 = vector.broadcast %cst_36 : f32 to vector<2x1xf32>
    %73 = arith.divf %71, %72 : vector<2x1xf32>
    %74 = vector.broadcast %66 : vector<2x1xf32> to vector<2x128xf32>
    %75 = arith.subf %62, %74 : vector<2x128xf32>
    %cst_37 = arith.constant 9.99999974E-6 : f32
    %76 = vector.broadcast %cst_37 : f32 to vector<2x1xf32>
    %77 = arith.addf %73, %76 : vector<2x1xf32>
    %78 = math.rsqrt %77 : vector<2x1xf32>
    %79 = vector.broadcast %78 : vector<2x1xf32> to vector<2x128xf32>
    %80 = arith.mulf %75, %79 : vector<2x128xf32>
    %81 = vector.broadcast %46 : vector<2x1xf32> to vector<2x128xf32>
    %82 = arith.mulf %80, %81 : vector<2x128xf32>
    %83 = vector.broadcast %47 : vector<2x1xf32> to vector<2x128xf32>
    %84 = arith.addf %82, %83 : vector<2x128xf32>
    %cst_38 = arith.constant 0.000000e+00 : f32
    %85 = vector.broadcast %cst_38 : f32 to vector<2x128xf32>
    %86 = arith.maximumf %84, %85 : vector<2x128xf32>
    %c0_39 = arith.constant 0 : index
    %c0_40 = arith.constant 0 : index
    %87 = vector.load %arg9[%c0_39, %c0_40] : memref<4x6xf32, #tpu.memory_space<vmem>>, vector<4x6xf32>
    %c0_41 = arith.constant 0 : index
    %c0_42 = arith.constant 0 : index
    %88 = vector.load %arg10[%c0_41, %c0_42] : memref<4x1xf32, #tpu.memory_space<vmem>>, vector<4x1xf32>
    %c0_43 = arith.constant 0 : index
    %c0_44 = arith.constant 0 : index
    %89 = vector.load %arg11[%c0_43, %c0_44] : memref<4x1xf32, #tpu.memory_space<vmem>>, vector<4x1xf32>
    %c0_45 = arith.constant 0 : index
    %c0_46 = arith.constant 0 : index
    %90 = vector.load %arg12[%c0_45, %c0_46] : memref<4x1xf32, #tpu.memory_space<vmem>>, vector<4x1xf32>
    %91 = tpu.iota {dimensions = array<i32: 1>} : vector<2x128xi32>
    %c0_i32_47 = arith.constant 0 : i32
    %92 = vector.broadcast %c0_i32_47 : i32 to vector<2x128xi32>
    %93 = arith.cmpi eq, %91, %92 : vector<2x128xi32>
    %c1_i32_48 = arith.constant 1 : i32
    %94 = tpu.dynamic_rotate %86 by %c1_i32_48 dim 1 : vector<2x128xf32>, i32 -> vector<2x128xf32>
    %cst_49 = arith.constant 0.000000e+00 : f32
    %95 = vector.broadcast %cst_49 : f32 to vector<2x128xf32>
    %96 = arith.select %93, %95, %94 : vector<2x128xi1>, vector<2x128xf32>
    %c127_i32_50 = arith.constant 127 : i32
    %97 = vector.broadcast %c127_i32_50 : i32 to vector<2x128xi32>
    %98 = arith.cmpi eq, %91, %97 : vector<2x128xi32>
    %c127_i32_51 = arith.constant 127 : i32
    %99 = tpu.dynamic_rotate %86 by %c127_i32_51 dim 1 : vector<2x128xf32>, i32 -> vector<2x128xf32>
    %cst_52 = arith.constant 0.000000e+00 : f32
    %100 = vector.broadcast %cst_52 : f32 to vector<2x128xf32>
    %101 = arith.select %98, %100, %99 : vector<2x128xi1>, vector<2x128xf32>
    %102 = tpu.concatenate %96, %86, %101 in 0 : vector<2x128xf32>, vector<2x128xf32>, vector<2x128xf32> -> vector<6x128xf32>
    %cst_53 = arith.constant dense<0.000000e+00> : vector<4x128xf32>
    %103 = tpu.matmul %87, %102, %cst_53 {dimension_numbers = #tpu.dot_dimension_numbers<[1], [0], [0], [1], [0, 0, 1, 1], [], []>} : vector<4x6xf32>, vector<6x128xf32>, vector<4x128xf32> -> vector<4x128xf32>
    %104 = vector.broadcast %88 : vector<4x1xf32> to vector<4x128xf32>
    %105 = arith.addf %103, %104 : vector<4x128xf32>
    %cst_54 = arith.constant dense<0.000000e+00> : vector<4xf32>
    %106 = vector.multi_reduction <add>, %105, %cst_54 [1] : vector<4x128xf32> to vector<4xf32>
    %107 = vector.shape_cast %106 : vector<4xf32> to vector<4x1xf32>
    %cst_55 = arith.constant 1.280000e+02 : f32
    %108 = vector.broadcast %cst_55 : f32 to vector<4x1xf32>
    %109 = arith.divf %107, %108 : vector<4x1xf32>
    %110 = vector.broadcast %109 : vector<4x1xf32> to vector<4x128xf32>
    %111 = arith.subf %105, %110 : vector<4x128xf32>
    %112 = arith.mulf %111, %111 : vector<4x128xf32>
    %cst_56 = arith.constant dense<0.000000e+00> : vector<4xf32>
    %113 = vector.multi_reduction <add>, %112, %cst_56 [1] : vector<4x128xf32> to vector<4xf32>
    %114 = vector.shape_cast %113 : vector<4xf32> to vector<4x1xf32>
    %cst_57 = arith.constant 1.280000e+02 : f32
    %115 = vector.broadcast %cst_57 : f32 to vector<4x1xf32>
    %116 = arith.divf %114, %115 : vector<4x1xf32>
    %117 = vector.broadcast %109 : vector<4x1xf32> to vector<4x128xf32>
    %118 = arith.subf %105, %117 : vector<4x128xf32>
    %cst_58 = arith.constant 9.99999974E-6 : f32
    %119 = vector.broadcast %cst_58 : f32 to vector<4x1xf32>
    %120 = arith.addf %116, %119 : vector<4x1xf32>
    %121 = math.rsqrt %120 : vector<4x1xf32>
    %122 = vector.broadcast %121 : vector<4x1xf32> to vector<4x128xf32>
    %123 = arith.mulf %118, %122 : vector<4x128xf32>
    %124 = vector.broadcast %89 : vector<4x1xf32> to vector<4x128xf32>
    %125 = arith.mulf %123, %124 : vector<4x128xf32>
    %126 = vector.broadcast %90 : vector<4x1xf32> to vector<4x128xf32>
    %127 = arith.addf %125, %126 : vector<4x128xf32>
    %cst_59 = arith.constant 0.000000e+00 : f32
    %128 = vector.broadcast %cst_59 : f32 to vector<4x128xf32>
    %129 = arith.maximumf %127, %128 : vector<4x128xf32>
    %c0_60 = arith.constant 0 : index
    %c0_61 = arith.constant 0 : index
    %130 = vector.load %arg13[%c0_60, %c0_61] : memref<4x12xf32, #tpu.memory_space<vmem>>, vector<4x12xf32>
    %c0_62 = arith.constant 0 : index
    %c0_63 = arith.constant 0 : index
    %131 = vector.load %arg14[%c0_62, %c0_63] : memref<4x1xf32, #tpu.memory_space<vmem>>, vector<4x1xf32>
    %c0_64 = arith.constant 0 : index
    %c0_65 = arith.constant 0 : index
    %132 = vector.load %arg15[%c0_64, %c0_65] : memref<4x1xf32, #tpu.memory_space<vmem>>, vector<4x1xf32>
    %c0_66 = arith.constant 0 : index
    %c0_67 = arith.constant 0 : index
    %133 = vector.load %arg16[%c0_66, %c0_67] : memref<4x1xf32, #tpu.memory_space<vmem>>, vector<4x1xf32>
    %134 = tpu.iota {dimensions = array<i32: 1>} : vector<4x128xi32>
    %c0_i32_68 = arith.constant 0 : i32
    %135 = vector.broadcast %c0_i32_68 : i32 to vector<4x128xi32>
    %136 = arith.cmpi eq, %134, %135 : vector<4x128xi32>
    %c1_i32_69 = arith.constant 1 : i32
    %137 = tpu.dynamic_rotate %129 by %c1_i32_69 dim 1 : vector<4x128xf32>, i32 -> vector<4x128xf32>
    %cst_70 = arith.constant 0.000000e+00 : f32
    %138 = vector.broadcast %cst_70 : f32 to vector<4x128xf32>
    %139 = arith.select %136, %138, %137 : vector<4x128xi1>, vector<4x128xf32>
    %c127_i32_71 = arith.constant 127 : i32
    %140 = vector.broadcast %c127_i32_71 : i32 to vector<4x128xi32>
    %141 = arith.cmpi eq, %134, %140 : vector<4x128xi32>
    %c127_i32_72 = arith.constant 127 : i32
    %142 = tpu.dynamic_rotate %129 by %c127_i32_72 dim 1 : vector<4x128xf32>, i32 -> vector<4x128xf32>
    %cst_73 = arith.constant 0.000000e+00 : f32
    %143 = vector.broadcast %cst_73 : f32 to vector<4x128xf32>
    %144 = arith.select %141, %143, %142 : vector<4x128xi1>, vector<4x128xf32>
    %145 = tpu.concatenate %139, %129, %144 in 0 : vector<4x128xf32>, vector<4x128xf32>, vector<4x128xf32> -> vector<12x128xf32>
    %cst_74 = arith.constant dense<0.000000e+00> : vector<4x128xf32>
    %146 = tpu.matmul %130, %145, %cst_74 {dimension_numbers = #tpu.dot_dimension_numbers<[1], [0], [0], [1], [0, 0, 1, 1], [], []>} : vector<4x12xf32>, vector<12x128xf32>, vector<4x128xf32> -> vector<4x128xf32>
    %147 = vector.broadcast %131 : vector<4x1xf32> to vector<4x128xf32>
    %148 = arith.addf %146, %147 : vector<4x128xf32>
    %cst_75 = arith.constant dense<0.000000e+00> : vector<4xf32>
    %149 = vector.multi_reduction <add>, %148, %cst_75 [1] : vector<4x128xf32> to vector<4xf32>
    %150 = vector.shape_cast %149 : vector<4xf32> to vector<4x1xf32>
    %cst_76 = arith.constant 1.280000e+02 : f32
    %151 = vector.broadcast %cst_76 : f32 to vector<4x1xf32>
    %152 = arith.divf %150, %151 : vector<4x1xf32>
    %153 = vector.broadcast %152 : vector<4x1xf32> to vector<4x128xf32>
    %154 = arith.subf %148, %153 : vector<4x128xf32>
    %155 = arith.mulf %154, %154 : vector<4x128xf32>
    %cst_77 = arith.constant dense<0.000000e+00> : vector<4xf32>
    %156 = vector.multi_reduction <add>, %155, %cst_77 [1] : vector<4x128xf32> to vector<4xf32>
    %157 = vector.shape_cast %156 : vector<4xf32> to vector<4x1xf32>
    %cst_78 = arith.constant 1.280000e+02 : f32
    %158 = vector.broadcast %cst_78 : f32 to vector<4x1xf32>
    %159 = arith.divf %157, %158 : vector<4x1xf32>
    %160 = vector.broadcast %152 : vector<4x1xf32> to vector<4x128xf32>
    %161 = arith.subf %148, %160 : vector<4x128xf32>
    %cst_79 = arith.constant 9.99999974E-6 : f32
    %162 = vector.broadcast %cst_79 : f32 to vector<4x1xf32>
    %163 = arith.addf %159, %162 : vector<4x1xf32>
    %164 = math.rsqrt %163 : vector<4x1xf32>
    %165 = vector.broadcast %164 : vector<4x1xf32> to vector<4x128xf32>
    %166 = arith.mulf %161, %165 : vector<4x128xf32>
    %167 = vector.broadcast %132 : vector<4x1xf32> to vector<4x128xf32>
    %168 = arith.mulf %166, %167 : vector<4x128xf32>
    %169 = vector.broadcast %133 : vector<4x1xf32> to vector<4x128xf32>
    %170 = arith.addf %168, %169 : vector<4x128xf32>
    %cst_80 = arith.constant 0.000000e+00 : f32
    %171 = vector.broadcast %cst_80 : f32 to vector<4x128xf32>
    %172 = arith.maximumf %170, %171 : vector<4x128xf32>
    %c0_81 = arith.constant 0 : index
    %c0_82 = arith.constant 0 : index
    %173 = vector.load %arg17[%c0_81, %c0_82] : memref<4x12xf32, #tpu.memory_space<vmem>>, vector<4x12xf32>
    %c0_83 = arith.constant 0 : index
    %c0_84 = arith.constant 0 : index
    %174 = vector.load %arg18[%c0_83, %c0_84] : memref<4x1xf32, #tpu.memory_space<vmem>>, vector<4x1xf32>
    %c0_85 = arith.constant 0 : index
    %c0_86 = arith.constant 0 : index
    %175 = vector.load %arg19[%c0_85, %c0_86] : memref<4x1xf32, #tpu.memory_space<vmem>>, vector<4x1xf32>
    %c0_87 = arith.constant 0 : index
    %c0_88 = arith.constant 0 : index
    %176 = vector.load %arg20[%c0_87, %c0_88] : memref<4x1xf32, #tpu.memory_space<vmem>>, vector<4x1xf32>
    %177 = tpu.iota {dimensions = array<i32: 1>} : vector<4x128xi32>
    %c0_i32_89 = arith.constant 0 : i32
    %178 = vector.broadcast %c0_i32_89 : i32 to vector<4x128xi32>
    %179 = arith.cmpi eq, %177, %178 : vector<4x128xi32>
    %c1_i32_90 = arith.constant 1 : i32
    %180 = tpu.dynamic_rotate %172 by %c1_i32_90 dim 1 : vector<4x128xf32>, i32 -> vector<4x128xf32>
    %cst_91 = arith.constant 0.000000e+00 : f32
    %181 = vector.broadcast %cst_91 : f32 to vector<4x128xf32>
    %182 = arith.select %179, %181, %180 : vector<4x128xi1>, vector<4x128xf32>
    %c127_i32_92 = arith.constant 127 : i32
    %183 = vector.broadcast %c127_i32_92 : i32 to vector<4x128xi32>
    %184 = arith.cmpi eq, %177, %183 : vector<4x128xi32>
    %c127_i32_93 = arith.constant 127 : i32
    %185 = tpu.dynamic_rotate %172 by %c127_i32_93 dim 1 : vector<4x128xf32>, i32 -> vector<4x128xf32>
    %cst_94 = arith.constant 0.000000e+00 : f32
    %186 = vector.broadcast %cst_94 : f32 to vector<4x128xf32>
    %187 = arith.select %184, %186, %185 : vector<4x128xi1>, vector<4x128xf32>
    %188 = tpu.concatenate %182, %172, %187 in 0 : vector<4x128xf32>, vector<4x128xf32>, vector<4x128xf32> -> vector<12x128xf32>
    %cst_95 = arith.constant dense<0.000000e+00> : vector<4x128xf32>
    %189 = tpu.matmul %173, %188, %cst_95 {dimension_numbers = #tpu.dot_dimension_numbers<[1], [0], [0], [1], [0, 0, 1, 1], [], []>} : vector<4x12xf32>, vector<12x128xf32>, vector<4x128xf32> -> vector<4x128xf32>
    %190 = vector.broadcast %174 : vector<4x1xf32> to vector<4x128xf32>
    %191 = arith.addf %189, %190 : vector<4x128xf32>
    %cst_96 = arith.constant dense<0.000000e+00> : vector<4xf32>
    %192 = vector.multi_reduction <add>, %191, %cst_96 [1] : vector<4x128xf32> to vector<4xf32>
    %193 = vector.shape_cast %192 : vector<4xf32> to vector<4x1xf32>
    %cst_97 = arith.constant 1.280000e+02 : f32
    %194 = vector.broadcast %cst_97 : f32 to vector<4x1xf32>
    %195 = arith.divf %193, %194 : vector<4x1xf32>
    %196 = vector.broadcast %195 : vector<4x1xf32> to vector<4x128xf32>
    %197 = arith.subf %191, %196 : vector<4x128xf32>
    %198 = arith.mulf %197, %197 : vector<4x128xf32>
    %cst_98 = arith.constant dense<0.000000e+00> : vector<4xf32>
    %199 = vector.multi_reduction <add>, %198, %cst_98 [1] : vector<4x128xf32> to vector<4xf32>
    %200 = vector.shape_cast %199 : vector<4xf32> to vector<4x1xf32>
    %cst_99 = arith.constant 1.280000e+02 : f32
    %201 = vector.broadcast %cst_99 : f32 to vector<4x1xf32>
    %202 = arith.divf %200, %201 : vector<4x1xf32>
    %203 = vector.broadcast %195 : vector<4x1xf32> to vector<4x128xf32>
    %204 = arith.subf %191, %203 : vector<4x128xf32>
    %cst_100 = arith.constant 9.99999974E-6 : f32
    %205 = vector.broadcast %cst_100 : f32 to vector<4x1xf32>
    %206 = arith.addf %202, %205 : vector<4x1xf32>
    %207 = math.rsqrt %206 : vector<4x1xf32>
    %208 = vector.broadcast %207 : vector<4x1xf32> to vector<4x128xf32>
    %209 = arith.mulf %204, %208 : vector<4x128xf32>
    %210 = vector.broadcast %175 : vector<4x1xf32> to vector<4x128xf32>
    %211 = arith.mulf %209, %210 : vector<4x128xf32>
    %212 = vector.broadcast %176 : vector<4x1xf32> to vector<4x128xf32>
    %213 = arith.addf %211, %212 : vector<4x128xf32>
    %cst_101 = arith.constant 0.000000e+00 : f32
    %214 = vector.broadcast %cst_101 : f32 to vector<4x128xf32>
    %215 = arith.maximumf %213, %214 : vector<4x128xf32>
    %c0_102 = arith.constant 0 : index
    %c0_103 = arith.constant 0 : index
    %216 = vector.load %arg21[%c0_102, %c0_103] : memref<8x12xf32, #tpu.memory_space<vmem>>, vector<8x12xf32>
    %c0_104 = arith.constant 0 : index
    %c0_105 = arith.constant 0 : index
    %217 = vector.load %arg22[%c0_104, %c0_105] : memref<8x1xf32, #tpu.memory_space<vmem>>, vector<8x1xf32>
    %c0_106 = arith.constant 0 : index
    %c0_107 = arith.constant 0 : index
    %218 = vector.load %arg23[%c0_106, %c0_107] : memref<8x1xf32, #tpu.memory_space<vmem>>, vector<8x1xf32>
    %c0_108 = arith.constant 0 : index
    %c0_109 = arith.constant 0 : index
    %219 = vector.load %arg24[%c0_108, %c0_109] : memref<8x1xf32, #tpu.memory_space<vmem>>, vector<8x1xf32>
    %220 = tpu.iota {dimensions = array<i32: 1>} : vector<4x128xi32>
    %c0_i32_110 = arith.constant 0 : i32
    %221 = vector.broadcast %c0_i32_110 : i32 to vector<4x128xi32>
    %222 = arith.cmpi eq, %220, %221 : vector<4x128xi32>
    %c1_i32_111 = arith.constant 1 : i32
    %223 = tpu.dynamic_rotate %215 by %c1_i32_111 dim 1 : vector<4x128xf32>, i32 -> vector<4x128xf32>
    %cst_112 = arith.constant 0.000000e+00 : f32
    %224 = vector.broadcast %cst_112 : f32 to vector<4x128xf32>
    %225 = arith.select %222, %224, %223 : vector<4x128xi1>, vector<4x128xf32>
    %c127_i32_113 = arith.constant 127 : i32
    %226 = vector.broadcast %c127_i32_113 : i32 to vector<4x128xi32>
    %227 = arith.cmpi eq, %220, %226 : vector<4x128xi32>
    %c127_i32_114 = arith.constant 127 : i32
    %228 = tpu.dynamic_rotate %215 by %c127_i32_114 dim 1 : vector<4x128xf32>, i32 -> vector<4x128xf32>
    %cst_115 = arith.constant 0.000000e+00 : f32
    %229 = vector.broadcast %cst_115 : f32 to vector<4x128xf32>
    %230 = arith.select %227, %229, %228 : vector<4x128xi1>, vector<4x128xf32>
    %231 = tpu.concatenate %225, %215, %230 in 0 : vector<4x128xf32>, vector<4x128xf32>, vector<4x128xf32> -> vector<12x128xf32>
    %cst_116 = arith.constant dense<0.000000e+00> : vector<8x128xf32>
    %232 = tpu.matmul %216, %231, %cst_116 {dimension_numbers = #tpu.dot_dimension_numbers<[1], [0], [0], [1], [0, 0, 1, 1], [], []>} : vector<8x12xf32>, vector<12x128xf32>, vector<8x128xf32> -> vector<8x128xf32>
    %233 = vector.broadcast %217 : vector<8x1xf32> to vector<8x128xf32>
    %234 = arith.addf %232, %233 : vector<8x128xf32>
    %cst_117 = arith.constant dense<0.000000e+00> : vector<8xf32>
    %235 = vector.multi_reduction <add>, %234, %cst_117 [1] : vector<8x128xf32> to vector<8xf32>
    %236 = vector.shape_cast %235 : vector<8xf32> to vector<8x1xf32>
    %cst_118 = arith.constant 1.280000e+02 : f32
    %237 = vector.broadcast %cst_118 : f32 to vector<8x1xf32>
    %238 = arith.divf %236, %237 : vector<8x1xf32>
    %239 = vector.broadcast %238 : vector<8x1xf32> to vector<8x128xf32>
    %240 = arith.subf %234, %239 : vector<8x128xf32>
    %241 = arith.mulf %240, %240 : vector<8x128xf32>
    %cst_119 = arith.constant dense<0.000000e+00> : vector<8xf32>
    %242 = vector.multi_reduction <add>, %241, %cst_119 [1] : vector<8x128xf32> to vector<8xf32>
    %243 = vector.shape_cast %242 : vector<8xf32> to vector<8x1xf32>
    %cst_120 = arith.constant 1.280000e+02 : f32
    %244 = vector.broadcast %cst_120 : f32 to vector<8x1xf32>
    %245 = arith.divf %243, %244 : vector<8x1xf32>
    %246 = vector.broadcast %238 : vector<8x1xf32> to vector<8x128xf32>
    %247 = arith.subf %234, %246 : vector<8x128xf32>
    %cst_121 = arith.constant 9.99999974E-6 : f32
    %248 = vector.broadcast %cst_121 : f32 to vector<8x1xf32>
    %249 = arith.addf %245, %248 : vector<8x1xf32>
    %250 = math.rsqrt %249 : vector<8x1xf32>
    %251 = vector.broadcast %250 : vector<8x1xf32> to vector<8x128xf32>
    %252 = arith.mulf %247, %251 : vector<8x128xf32>
    %253 = vector.broadcast %218 : vector<8x1xf32> to vector<8x128xf32>
    %254 = arith.mulf %252, %253 : vector<8x128xf32>
    %255 = vector.broadcast %219 : vector<8x1xf32> to vector<8x128xf32>
    %256 = arith.addf %254, %255 : vector<8x128xf32>
    %cst_122 = arith.constant 0.000000e+00 : f32
    %257 = vector.broadcast %cst_122 : f32 to vector<8x128xf32>
    %258 = arith.maximumf %256, %257 : vector<8x128xf32>
    %c0_123 = arith.constant 0 : index
    %c0_124 = arith.constant 0 : index
    %259 = vector.load %arg25[%c0_123, %c0_124] : memref<8x24xf32, #tpu.memory_space<vmem>>, vector<8x24xf32>
    %c0_125 = arith.constant 0 : index
    %c0_126 = arith.constant 0 : index
    %260 = vector.load %arg26[%c0_125, %c0_126] : memref<8x1xf32, #tpu.memory_space<vmem>>, vector<8x1xf32>
    %c0_127 = arith.constant 0 : index
    %c0_128 = arith.constant 0 : index
    %261 = vector.load %arg27[%c0_127, %c0_128] : memref<8x1xf32, #tpu.memory_space<vmem>>, vector<8x1xf32>
    %c0_129 = arith.constant 0 : index
    %c0_130 = arith.constant 0 : index
    %262 = vector.load %arg28[%c0_129, %c0_130] : memref<8x1xf32, #tpu.memory_space<vmem>>, vector<8x1xf32>
    %263 = tpu.iota {dimensions = array<i32: 1>} : vector<8x128xi32>
    %c0_i32_131 = arith.constant 0 : i32
    %264 = vector.broadcast %c0_i32_131 : i32 to vector<8x128xi32>
    %265 = arith.cmpi eq, %263, %264 : vector<8x128xi32>
    %c1_i32_132 = arith.constant 1 : i32
    %266 = tpu.dynamic_rotate %258 by %c1_i32_132 dim 1 : vector<8x128xf32>, i32 -> vector<8x128xf32>
    %cst_133 = arith.constant 0.000000e+00 : f32
    %267 = vector.broadcast %cst_133 : f32 to vector<8x128xf32>
    %268 = arith.select %265, %267, %266 : vector<8x128xi1>, vector<8x128xf32>
    %c127_i32_134 = arith.constant 127 : i32
    %269 = vector.broadcast %c127_i32_134 : i32 to vector<8x128xi32>
    %270 = arith.cmpi eq, %263, %269 : vector<8x128xi32>
    %c127_i32_135 = arith.constant 127 : i32
    %271 = tpu.dynamic_rotate %258 by %c127_i32_135 dim 1 : vector<8x128xf32>, i32 -> vector<8x128xf32>
    %cst_136 = arith.constant 0.000000e+00 : f32
    %272 = vector.broadcast %cst_136 : f32 to vector<8x128xf32>
    %273 = arith.select %270, %272, %271 : vector<8x128xi1>, vector<8x128xf32>
    %274 = tpu.concatenate %268, %258, %273 in 0 : vector<8x128xf32>, vector<8x128xf32>, vector<8x128xf32> -> vector<24x128xf32>
    %cst_137 = arith.constant dense<0.000000e+00> : vector<8x128xf32>
    %275 = tpu.matmul %259, %274, %cst_137 {dimension_numbers = #tpu.dot_dimension_numbers<[1], [0], [0], [1], [0, 0, 1, 1], [], []>} : vector<8x24xf32>, vector<24x128xf32>, vector<8x128xf32> -> vector<8x128xf32>
    %276 = vector.broadcast %260 : vector<8x1xf32> to vector<8x128xf32>
    %277 = arith.addf %275, %276 : vector<8x128xf32>
    %cst_138 = arith.constant dense<0.000000e+00> : vector<8xf32>
    %278 = vector.multi_reduction <add>, %277, %cst_138 [1] : vector<8x128xf32> to vector<8xf32>
    %279 = vector.shape_cast %278 : vector<8xf32> to vector<8x1xf32>
    %cst_139 = arith.constant 1.280000e+02 : f32
    %280 = vector.broadcast %cst_139 : f32 to vector<8x1xf32>
    %281 = arith.divf %279, %280 : vector<8x1xf32>
    %282 = vector.broadcast %281 : vector<8x1xf32> to vector<8x128xf32>
    %283 = arith.subf %277, %282 : vector<8x128xf32>
    %284 = arith.mulf %283, %283 : vector<8x128xf32>
    %cst_140 = arith.constant dense<0.000000e+00> : vector<8xf32>
    %285 = vector.multi_reduction <add>, %284, %cst_140 [1] : vector<8x128xf32> to vector<8xf32>
    %286 = vector.shape_cast %285 : vector<8xf32> to vector<8x1xf32>
    %cst_141 = arith.constant 1.280000e+02 : f32
    %287 = vector.broadcast %cst_141 : f32 to vector<8x1xf32>
    %288 = arith.divf %286, %287 : vector<8x1xf32>
    %289 = vector.broadcast %281 : vector<8x1xf32> to vector<8x128xf32>
    %290 = arith.subf %277, %289 : vector<8x128xf32>
    %cst_142 = arith.constant 9.99999974E-6 : f32
    %291 = vector.broadcast %cst_142 : f32 to vector<8x1xf32>
    %292 = arith.addf %288, %291 : vector<8x1xf32>
    %293 = math.rsqrt %292 : vector<8x1xf32>
    %294 = vector.broadcast %293 : vector<8x1xf32> to vector<8x128xf32>
    %295 = arith.mulf %290, %294 : vector<8x128xf32>
    %296 = vector.broadcast %261 : vector<8x1xf32> to vector<8x128xf32>
    %297 = arith.mulf %295, %296 : vector<8x128xf32>
    %298 = vector.broadcast %262 : vector<8x1xf32> to vector<8x128xf32>
    %299 = arith.addf %297, %298 : vector<8x128xf32>
    %300 = arith.negf %299 : vector<8x128xf32>
    %301 = math.exp %300 : vector<8x128xf32>
    %cst_143 = arith.constant 1.000000e+00 : f32
    %302 = vector.broadcast %cst_143 : f32 to vector<8x128xf32>
    %303 = arith.addf %302, %301 : vector<8x128xf32>
    %304 = arith.divf %302, %303 : vector<8x128xf32>
    %c0_144 = arith.constant 0 : index
    %c0_145 = arith.constant 0 : index
    %305 = vector.load %arg29[%c0_144, %c0_145] : memref<8x128xf32, #tpu.memory_space<vmem>>, vector<8x128xf32>
    tpu.vector_store %arg29[%c0_144, %c0_145], %304 {strides = array<i32>} : memref<8x128xf32, #tpu.memory_space<vmem>>, vector<8x128xf32>,
    return
  }
}

</mosaic_0001>

<llo_original>
// kernel: cnn_nodes_forward.1
$region0: #{cnn_nodes_forward.1}
  #allocation0 [shape = 'u32[]', space=smem, size = 0x4, offset = 0x4, fixed_abs, tag = 'smem constant byte address 0x4 - core index']
  #allocation1 [shape = 'u32[144,128]{1,0:T(1,128)}', space=vmem, size = 0x12000, scoped, tag = 'internal scratch']
  %s0 = inlined_call_operand.smem [shape: u32[30], index: -1, kind: input, shape index: {}]
  %s1 = sld [smem:[%s0]]
  %s2 = scalar_lea.smem %s0, 1
  %s3 = sld [smem:[%s2]]
  %s4 = scalar_lea.smem %s0, 2
  %s5 = sld [smem:[%s4]]
  %s6 = scalar_lea.smem %s0, 3
  %s7 = sld [smem:[%s6]]
  %s8 = scalar_lea.smem %s0, 4
  %s9 = sld [smem:[%s8]]
  %s10 = scalar_lea.smem %s0, 5
  %s11 = sld [smem:[%s10]]
  %s12 = scalar_lea.smem %s0, 6
  %s13 = sld [smem:[%s12]]
  %s14 = scalar_lea.smem %s0, 7
  %s15 = sld [smem:[%s14]]
  %s16 = scalar_lea.smem %s0, 8
  %s17 = sld [smem:[%s16]]
  %s18 = scalar_lea.smem %s0, 9
  %s19 = sld [smem:[%s18]]
  %s20 = scalar_lea.smem %s0, 10
  %s21 = sld [smem:[%s20]]
  %s22 = scalar_lea.smem %s0, 11
  %s23 = sld [smem:[%s22]]
  %s24 = scalar_lea.smem %s0, 12
  %s25 = sld [smem:[%s24]]
  %s26 = scalar_lea.smem %s0, 13
  %s27 = sld [smem:[%s26]]
  %s28 = scalar_lea.smem %s0, 14
  %s29 = sld [smem:[%s28]]
  %s30 = scalar_lea.smem %s0, 15
  %s31 = sld [smem:[%s30]]
  %s32 = scalar_lea.smem %s0, 16
  %s33 = sld [smem:[%s32]]
  %s34 = scalar_lea.smem %s0, 17
  %s35 = sld [smem:[%s34]]
  %s36 = scalar_lea.smem %s0, 18
  %s37 = sld [smem:[%s36]]
  %s38 = scalar_lea.smem %s0, 19
  %s39 = sld [smem:[%s38]]
  %s40 = scalar_lea.smem %s0, 20
  %s41 = sld [smem:[%s40]]
  %s42 = scalar_lea.smem %s0, 21
  %s43 = sld [smem:[%s42]]
  %s44 = scalar_lea.smem %s0, 22
  %s45 = sld [smem:[%s44]]
  %s46 = scalar_lea.smem %s0, 23
  %s47 = sld [smem:[%s46]]
  %s48 = scalar_lea.smem %s0, 24
  %s49 = sld [smem:[%s48]]
  %s50 = scalar_lea.smem %s0, 25
  %s51 = sld [smem:[%s50]]
  %s52 = scalar_lea.smem %s0, 26
  %s53 = sld [smem:[%s52]]
  %s54 = scalar_lea.smem %s0, 27
  %s55 = sld [smem:[%s54]]
  %s56 = scalar_lea.smem %s0, 28
  %s57 = sld [smem:[%s56]]
  %s58 = scalar_lea.smem %s0, 29
  %s59 = sld [smem:[%s58]]
  %s60 = sld [smem:[#allocation0]]
  $region126: #{cnn_nodes_forward.1} parent=0
    _
  %s62 = ssub.s32 1, %s60
  %s63 = scalar_select 0, %s62, %s60
  $region1: #{cnn_nodes_forward.1} parent=0
    #allocation2 [shape = 'u8[4096]{0}', space=vmem, size = 0x1000, scoped, tag = 'output window, operand 0, single buffered']
    #allocation3 [shape = 's32[1]{0}', space=sflag, size = 0x4, scoped, tag = 'scoped memory for cnn_nodes_forward.1']
    %64 = vsyncpa [#allocation3], 0
    // Predicated region
    $region2: #{cnn_nodes_forward.1} parent=1 // pred_check
      _
    $region3: #{cnn_nodes_forward.1} parent=1 // pred_check_branch
      %66 = sbr.rel (0) target = $region5
    $region4: #{cnn_nodes_forward.1} parent=1 // pred_region
      _
    $region5: #{cnn_nodes_forward.1} parent=1 // pred_fallthru
      _
    // Predicated region
    $region6: #{cnn_nodes_forward.1} parent=1 // pred_check
      _
    $region7: #{cnn_nodes_forward.1} parent=1 // pred_check_branch
      %68 = sbr.rel (0) target = $region9
    $region8: #{cnn_nodes_forward.1} parent=1 // pred_region
      _
    $region9: #{cnn_nodes_forward.1} parent=1 // pred_fallthru
      _
    // Predicated region
    $region10: #{cnn_nodes_forward.1} parent=1 // pred_check
      _
    $region11: #{cnn_nodes_forward.1} parent=1 // pred_check_branch
      %70 = sbr.rel (0) target = $region13
    $region12: #{cnn_nodes_forward.1} parent=1 // pred_region
      _
    $region13: #{cnn_nodes_forward.1} parent=1 // pred_fallthru
      _
    // Predicated region
    $region14: #{cnn_nodes_forward.1} parent=1 // pred_check
      _
    $region15: #{cnn_nodes_forward.1} parent=1 // pred_check_branch
      %72 = sbr.rel (0) target = $region17
    $region16: #{cnn_nodes_forward.1} parent=1 // pred_region
      _
    $region17: #{cnn_nodes_forward.1} parent=1 // pred_fallthru
      _
    // Predicated region
    $region18: #{cnn_nodes_forward.1} parent=1 // pred_check
      _
    $region19: #{cnn_nodes_forward.1} parent=1 // pred_check_branch
      %74 = sbr.rel (0) target = $region21
    $region20: #{cnn_nodes_forward.1} parent=1 // pred_region
      _
    $region21: #{cnn_nodes_forward.1} parent=1 // pred_fallthru
      _
    // Predicated region
    $region22: #{cnn_nodes_forward.1} parent=1 // pred_check
      _
    $region23: #{cnn_nodes_forward.1} parent=1 // pred_check_branch
      %76 = sbr.rel (0) target = $region25
    $region24: #{cnn_nodes_forward.1} parent=1 // pred_region
      _
    $region25: #{cnn_nodes_forward.1} parent=1 // pred_fallthru
      _
    // Predicated region
    $region26: #{cnn_nodes_forward.1} parent=1 // pred_check
      _
    $region27: #{cnn_nodes_forward.1} parent=1 // pred_check_branch
      %78 = sbr.rel (0) target = $region29
    $region28: #{cnn_nodes_forward.1} parent=1 // pred_region
      _
    $region29: #{cnn_nodes_forward.1} parent=1 // pred_fallthru
      _
    // Predicated region
    $region30: #{cnn_nodes_forward.1} parent=1 // pred_check
      _
    $region31: #{cnn_nodes_forward.1} parent=1 // pred_check_branch
      %80 = sbr.rel (0) target = $region33
    $region32: #{cnn_nodes_forward.1} parent=1 // pred_region
      _
    $region33: #{cnn_nodes_forward.1} parent=1 // pred_fallthru
      _
    // Predicated region
    $region34: #{cnn_nodes_forward.1} parent=1 // pred_check
      _
    $region35: #{cnn_nodes_forward.1} parent=1 // pred_check_branch
      %82 = sbr.rel (0) target = $region37
    $region36: #{cnn_nodes_forward.1} parent=1 // pred_region
      _
    $region37: #{cnn_nodes_forward.1} parent=1 // pred_fallthru
      _
    // Predicated region
    $region38: #{cnn_nodes_forward.1} parent=1 // pred_check
      _
    $region39: #{cnn_nodes_forward.1} parent=1 // pred_check_branch
      %84 = sbr.rel (0) target = $region41
    $region40: #{cnn_nodes_forward.1} parent=1 // pred_region
      _
    $region41: #{cnn_nodes_forward.1} parent=1 // pred_fallthru
      _
    // Predicated region
    $region42: #{cnn_nodes_forward.1} parent=1 // pred_check
      _
    $region43: #{cnn_nodes_forward.1} parent=1 // pred_check_branch
      %86 = sbr.rel (0) target = $region45
    $region44: #{cnn_nodes_forward.1} parent=1 // pred_region
      _
    $region45: #{cnn_nodes_forward.1} parent=1 // pred_fallthru
      _
    // Predicated region
    $region46: #{cnn_nodes_forward.1} parent=1 // pred_check
      _
    $region47: #{cnn_nodes_forward.1} parent=1 // pred_check_branch
      %88 = sbr.rel (0) target = $region49
    $region48: #{cnn_nodes_forward.1} parent=1 // pred_region
      _
    $region49: #{cnn_nodes_forward.1} parent=1 // pred_fallthru
      _
    // Predicated region
    $region50: #{cnn_nodes_forward.1} parent=1 // pred_check
      _
    $region51: #{cnn_nodes_forward.1} parent=1 // pred_check_branch
      %90 = sbr.rel (0) target = $region53
    $region52: #{cnn_nodes_forward.1} parent=1 // pred_region
      _
    $region53: #{cnn_nodes_forward.1} parent=1 // pred_fallthru
      _
    // Predicated region
    $region54: #{cnn_nodes_forward.1} parent=1 // pred_check
      _
    $region55: #{cnn_nodes_forward.1} parent=1 // pred_check_branch
      %92 = sbr.rel (0) target = $region57
    $region56: #{cnn_nodes_forward.1} parent=1 // pred_region
      _
    $region57: #{cnn_nodes_forward.1} parent=1 // pred_fallthru
      _
    // Predicated region
    $region58: #{cnn_nodes_forward.1} parent=1 // pred_check
      _
    $region59: #{cnn_nodes_forward.1} parent=1 // pred_check_branch
      %94 = sbr.rel (0) target = $region61
    $region60: #{cnn_nodes_forward.1} parent=1 // pred_region
      _
    $region61: #{cnn_nodes_forward.1} parent=1 // pred_fallthru
      _
    // Predicated region
    $region62: #{cnn_nodes_forward.1} parent=1 // pred_check
      _
    $region63: #{cnn_nodes_forward.1} parent=1 // pred_check_branch
      %96 = sbr.rel (0) target = $region65
    $region64: #{cnn_nodes_forward.1} parent=1 // pred_region
      _
    $region65: #{cnn_nodes_forward.1} parent=1 // pred_fallthru
      _
    // Predicated region
    $region66: #{cnn_nodes_forward.1} parent=1 // pred_check
      _
    $region67: #{cnn_nodes_forward.1} parent=1 // pred_check_branch
      %98 = sbr.rel (0) target = $region69
    $region68: #{cnn_nodes_forward.1} parent=1 // pred_region
      _
    $region69: #{cnn_nodes_forward.1} parent=1 // pred_fallthru
      _
    // Predicated region
    $region70: #{cnn_nodes_forward.1} parent=1 // pred_check
      _
    $region71: #{cnn_nodes_forward.1} parent=1 // pred_check_branch
      %100 = sbr.rel (0) target = $region73
    $region72: #{cnn_nodes_forward.1} parent=1 // pred_region
      _
    $region73: #{cnn_nodes_forward.1} parent=1 // pred_fallthru
      _
    // Predicated region
    $region74: #{cnn_nodes_forward.1} parent=1 // pred_check
      _
    $region75: #{cnn_nodes_forward.1} parent=1 // pred_check_branch
      %102 = sbr.rel (0) target = $region77
    $region76: #{cnn_nodes_forward.1} parent=1 // pred_region
      _
    $region77: #{cnn_nodes_forward.1} parent=1 // pred_fallthru
      _
    // Predicated region
    $region78: #{cnn_nodes_forward.1} parent=1 // pred_check
      _
    $region79: #{cnn_nodes_forward.1} parent=1 // pred_check_branch
      %104 = sbr.rel (0) target = $region81
    $region80: #{cnn_nodes_forward.1} parent=1 // pred_region
      _
    $region81: #{cnn_nodes_forward.1} parent=1 // pred_fallthru
      _
    // Predicated region
    $region82: #{cnn_nodes_forward.1} parent=1 // pred_check
      _
    $region83: #{cnn_nodes_forward.1} parent=1 // pred_check_branch
      %106 = sbr.rel (0) target = $region85
    $region84: #{cnn_nodes_forward.1} parent=1 // pred_region
      _
    $region85: #{cnn_nodes_forward.1} parent=1 // pred_fallthru
      _
    // Predicated region
    $region86: #{cnn_nodes_forward.1} parent=1 // pred_check
      _
    $region87: #{cnn_nodes_forward.1} parent=1 // pred_check_branch
      %108 = sbr.rel (0) target = $region89
    $region88: #{cnn_nodes_forward.1} parent=1 // pred_region
      _
    $region89: #{cnn_nodes_forward.1} parent=1 // pred_fallthru
      _
    // Predicated region
    $region90: #{cnn_nodes_forward.1} parent=1 // pred_check
      _
    $region91: #{cnn_nodes_forward.1} parent=1 // pred_check_branch
      %110 = sbr.rel (0) target = $region93
    $region92: #{cnn_nodes_forward.1} parent=1 // pred_region
      _
    $region93: #{cnn_nodes_forward.1} parent=1 // pred_fallthru
      _
    // Predicated region
    $region94: #{cnn_nodes_forward.1} parent=1 // pred_check
      _
    $region95: #{cnn_nodes_forward.1} parent=1 // pred_check_branch
      %112 = sbr.rel (0) target = $region97
    $region96: #{cnn_nodes_forward.1} parent=1 // pred_region
      _
    $region97: #{cnn_nodes_forward.1} parent=1 // pred_fallthru
      _
    // Predicated region
    $region98: #{cnn_nodes_forward.1} parent=1 // pred_check
      _
    $region99: #{cnn_nodes_forward.1} parent=1 // pred_check_branch
      %114 = sbr.rel (0) target = $region101
    $region100: #{cnn_nodes_forward.1} parent=1 // pred_region
      _
    $region101: #{cnn_nodes_forward.1} parent=1 // pred_fallthru
      _
    // Predicated region
    $region102: #{cnn_nodes_forward.1} parent=1 // pred_check
      _
    $region103: #{cnn_nodes_forward.1} parent=1 // pred_check_branch
      %116 = sbr.rel (0) target = $region105
    $region104: #{cnn_nodes_forward.1} parent=1 // pred_region
      _
    $region105: #{cnn_nodes_forward.1} parent=1 // pred_fallthru
      _
    // Predicated region
    $region106: #{cnn_nodes_forward.1} parent=1 // pred_check
      _
    $region107: #{cnn_nodes_forward.1} parent=1 // pred_check_branch
      %118 = sbr.rel (0) target = $region109
    $region108: #{cnn_nodes_forward.1} parent=1 // pred_region
      _
    $region109: #{cnn_nodes_forward.1} parent=1 // pred_fallthru
      _
    // Predicated region
    $region110: #{cnn_nodes_forward.1} parent=1 // pred_check
      _
    $region111: #{cnn_nodes_forward.1} parent=1 // pred_check_branch
      %120 = sbr.rel (0) target = $region113
    $region112: #{cnn_nodes_forward.1} parent=1 // pred_region
      _
    $region113: #{cnn_nodes_forward.1} parent=1 // pred_fallthru
      _
    // Predicated region
    $region114: #{cnn_nodes_forward.1} parent=1 // pred_check
      _
    $region115: #{cnn_nodes_forward.1} parent=1 // pred_check_branch
      %122 = sbr.rel (0) target = $region117
    $region116: #{cnn_nodes_forward.1} parent=1 // pred_region
      _
    $region117: #{cnn_nodes_forward.1} parent=1 // pred_fallthru
      _
    %v123 = vld [vmem:[%s1] sm:$0x1]
    %v124 = vld [vmem:[%s3] sm:$0x3]
    %v125 = vld [vmem:[%s5] sm:$0x3]
    %v126 = vld [vmem:[%s7] sm:$0x3]
    %v127 = vld [vmem:[%s9] sm:$0x3]
    %v128 = vlaneseq
    %v129 = vand.u32 %v128, 127
    %vm130 = vcmp.eq.s32.totalorder %v129, 0
    %131 = vrot.lane.b32.xlu0 %v123, 1
    %v132 = vpop.permute.xlu0 %131
    %v133 = vsel %vm130, 0.0, %v132
    %vm134 = vcmp.eq.s32.totalorder %v129, 127
    %135 = vrot.lane.b32.xlu0 %v123, 127
    %v136 = vpop.permute.xlu0 %135
    %v137 = vsel %vm134, 0.0, %v136
    %v139 = vlaneseq
    %v140 = vshrl.u32 %v139, 7
    %v141 = vsub.s32 0, %v140
    %v142 = vrot.slane %v123, %v141
    %v145 = vrot.slane %v137, 6
    %vm147 = vcmask 1040384
    %v148 = vsel %vm147, %v133, %v142
    %vm149 = vcmask 1041408
    %v150 = vsel %vm149, %v148, %v145
    %152 = vset.pattern.permute.xlu0 0
    %153 = vperm.xlu0 %152, %v125
    %v154 = vpop.permute.xlu0 %153
    %vm156 = vcmask 23552
    %v158 = vsel %vm156, %v124, 0
    %vm160 = vcmask 1042432
    %v162 = vsel %vm160, %v150, 0
    %164 = vmatprep.subr.mxu0 0.0
    %165 = vmatpush1.msra.mxu0 %v162
    %166 = vmatprep.subr.mxu0 0.0
    %167 = vmatpush1.msra.mxu0 0.0
    %168 = vmatprep.subr.mxu0 0.0
    %169 = vmatpush1.msra.mxu0 0.0
    %170 = vmatprep.subr.mxu0 0.0
    %171 = vmatpush1.msra.mxu0 0.0
    %172 = vmatprep.subr.mxu0 0.0
    %173 = vmatpush1.msra.mxu0 0.0
    %174 = vmatprep.subr.mxu0 0.0
    %175 = vmatpush1.msra.mxu0 0.0
    %176 = vmatprep.subr.mxu0 0.0
    %177 = vmatpush1.msra.mxu0 0.0
    %178 = vmatprep.subr.mxu0 0.0
    %179 = vmatpush1.msra.mxu0 0.0
    %180 = vmatprep.subr.mxu0 0.0
    %181 = vmatpush1.msra.mxu0 0.0
    %182 = vmatprep.subr.mxu0 0.0
    %183 = vmatpush1.msra.mxu0 0.0
    %184 = vmatprep.subr.mxu0 0.0
    %185 = vmatpush1.msra.mxu0 0.0
    %186 = vmatprep.subr.mxu0 0.0
    %187 = vmatpush1.msra.mxu0 0.0
    %188 = vmatprep.subr.mxu0 0.0
    %189 = vmatpush1.msra.mxu0 0.0
    %190 = vmatprep.subr.mxu0 0.0
    %191 = vmatpush1.msra.mxu0 0.0
    %192 = vmatprep.subr.mxu0 0.0
    %193 = vmatpush1.msra.mxu0 0.0
    %194 = vmatprep.subr.mxu0 0.0
    %195 = vmatpush1.msra.mxu0 0.0
    %196 = vmatprep.subr.mxu0 0.0
    %197 = vmatpush1.msra.mxu0 0.0
    %198 = vmatprep.subr.mxu0 0.0
    %199 = vmatpush1.msra.mxu0 0.0
    %200 = vmatprep.subr.mxu0 0.0
    %201 = vmatpush1.msra.mxu0 0.0
    %202 = vmatprep.subr.mxu0 0.0
    %203 = vmatpush1.msra.mxu0 0.0
    %204 = vmatprep.subr.mxu0 0.0
    %205 = vmatpush1.msra.mxu0 0.0
    %206 = vmatprep.subr.mxu0 0.0
    %207 = vmatpush1.msra.mxu0 0.0
    %208 = vmatprep.subr.mxu0 0.0
    %209 = vmatpush1.msra.mxu0 0.0
    %210 = vmatprep.subr.mxu0 0.0
    %211 = vmatpush1.msra.mxu0 0.0
    %212 = vmatprep.subr.mxu0 0.0
    %213 = vmatpush1.msra.mxu0 0.0
    %214 = vmatprep.subr.mxu0 0.0
    %215 = vmatpush1.msra.mxu0 0.0
    %216 = vmatprep.subr.mxu0 0.0
    %217 = vmatpush1.msra.mxu0 0.0
    %218 = vmatprep.subr.mxu0 0.0
    %219 = vmatpush1.msra.mxu0 0.0
    %220 = vmatprep.subr.mxu0 0.0
    %221 = vmatpush1.msra.mxu0 0.0
    %222 = vmatprep.subr.mxu0 0.0
    %223 = vmatpush1.msra.mxu0 0.0
    %224 = vmatprep.subr.mxu0 0.0
    %225 = vmatpush1.msra.mxu0 0.0
    %226 = vmatprep.subr.mxu0 0.0
    %227 = vmatpush1.msra.mxu0 0.0
    %228 = vmatprep.mubr.f32.mxu0 0.0
    %229 = vmatmul.mubr.f32.gmra.mrb[0].mxu0 %v158
    %v230 = vpop.f32.mrb[0].mxu0
    %v231 = vadd.f32 %v154, %v230
    %v232 = vpop.f32.mrb[0].mxu0
    %233 = vdwg.mxu0
    %v234 = vsel %vm149, %v231, 0.0
    %235 = vadd.xlane.f32.xlu0 %v234
    %v236 = vpop.xlane.xlu0 %235
    %v237 = vrcp.pop 128.0
    %v238 = vmul.f32 %v236, %v237
    %v239 = vsub.f32 %v231, %v238
    %v240 = vmul.f32 %v239, %v239
    %v241 = vsel %vm149, %v240, 0.0
    %242 = vadd.xlane.f32.xlu0 %v241
    %v243 = vpop.xlane.xlu0 %242
    %v244 = vmul.f32 %v243, %v237
    %v245 = vadd.f32 %v244, 1e-05
    %v246 = vrsqrt.pop %v245
    %v247 = vmul.f32 %v239, %v246
    %249 = vset.pattern.permute.xlu0 0
    %250 = vperm.xlu0 %249, %v126
    %v251 = vpop.permute.xlu0 %250
    %v253 = vmul.f32 %v247, %v251
    %255 = vset.pattern.permute.xlu0 0
    %256 = vperm.xlu0 %255, %v127
    %v257 = vpop.permute.xlu0 %256
    %v259 = vadd.f32 %v253, %v257
    %v260 = vmax.f32 %v259, 0.0
    %v261 = vld [vmem:[%s11] sm:$0x3]
    %v262 = vld [vmem:[%s13] sm:$0x3]
    %v263 = vld [vmem:[%s15] sm:$0x3]
    %v264 = vld [vmem:[%s17] sm:$0x3]
    %265 = vrot.lane.b32.xlu0 %v260, 1
    %v266 = vpop.permute.xlu0 %265
    %v267 = vsel %vm130, 0.0, %v266
    %268 = vrot.lane.b32.xlu0 %v260, 127
    %v269 = vpop.permute.xlu0 %268
    %v270 = vsel %vm134, 0.0, %v269
    %v272 = vrot.slane %v260, 6
    %v275 = vrot.slane %v270, 4
    %v277 = vsel %vm149, %v267, %v272
    %vm278 = vcmask 1043456
    %v279 = vsel %vm278, %v277, %v275
    %281 = vset.pattern.permute.xlu0 0
    %282 = vperm.xlu0 %281, %v262
    %v283 = vpop.permute.xlu0 %282
    %vm285 = vcmask 48128
    %v287 = vsel %vm285, %v261, 0
    %vm289 = vcmask 1045504
    %v291 = vsel %vm289, %v279, 0
    %293 = vmatprep.subr.mxu0 0.0
    %294 = vmatpush1.msra.mxu0 %v291
    %295 = vmatprep.subr.mxu0 0.0
    %296 = vmatpush1.msra.mxu0 0.0
    %297 = vmatprep.subr.mxu0 0.0
    %298 = vmatpush1.msra.mxu0 0.0
    %299 = vmatprep.subr.mxu0 0.0
    %300 = vmatpush1.msra.mxu0 0.0
    %301 = vmatprep.subr.mxu0 0.0
    %302 = vmatpush1.msra.mxu0 0.0
    %303 = vmatprep.subr.mxu0 0.0
    %304 = vmatpush1.msra.mxu0 0.0
    %305 = vmatprep.subr.mxu0 0.0
    %306 = vmatpush1.msra.mxu0 0.0
    %307 = vmatprep.subr.mxu0 0.0
    %308 = vmatpush1.msra.mxu0 0.0
    %309 = vmatprep.subr.mxu0 0.0
    %310 = vmatpush1.msra.mxu0 0.0
    %311 = vmatprep.subr.mxu0 0.0
    %312 = vmatpush1.msra.mxu0 0.0
    %313 = vmatprep.subr.mxu0 0.0
    %314 = vmatpush1.msra.mxu0 0.0
    %315 = vmatprep.subr.mxu0 0.0
    %316 = vmatpush1.msra.mxu0 0.0
    %317 = vmatprep.subr.mxu0 0.0
    %318 = vmatpush1.msra.mxu0 0.0
    %319 = vmatprep.subr.mxu0 0.0
    %320 = vmatpush1.msra.mxu0 0.0
    %321 = vmatprep.subr.mxu0 0.0
    %322 = vmatpush1.msra.mxu0 0.0
    %323 = vmatprep.subr.mxu0 0.0
    %324 = vmatpush1.msra.mxu0 0.0
    %325 = vmatprep.subr.mxu0 0.0
    %326 = vmatpush1.msra.mxu0 0.0
    %327 = vmatprep.subr.mxu0 0.0
    %328 = vmatpush1.msra.mxu0 0.0
    %329 = vmatprep.subr.mxu0 0.0
    %330 = vmatpush1.msra.mxu0 0.0
    %331 = vmatprep.subr.mxu0 0.0
    %332 = vmatpush1.msra.mxu0 0.0
    %333 = vmatprep.subr.mxu0 0.0
    %334 = vmatpush1.msra.mxu0 0.0
    %335 = vmatprep.subr.mxu0 0.0
    %336 = vmatpush1.msra.mxu0 0.0
    %337 = vmatprep.subr.mxu0 0.0
    %338 = vmatpush1.msra.mxu0 0.0
    %339 = vmatprep.subr.mxu0 0.0
    %340 = vmatpush1.msra.mxu0 0.0
    %341 = vmatprep.subr.mxu0 0.0
    %342 = vmatpush1.msra.mxu0 0.0
    %343 = vmatprep.subr.mxu0 0.0
    %344 = vmatpush1.msra.mxu0 0.0
    %345 = vmatprep.subr.mxu0 0.0
    %346 = vmatpush1.msra.mxu0 0.0
    %347 = vmatprep.subr.mxu0 0.0
    %348 = vmatpush1.msra.mxu0 0.0
    %349 = vmatprep.subr.mxu0 0.0
    %350 = vmatpush1.msra.mxu0 0.0
    %351 = vmatprep.subr.mxu0 0.0
    %352 = vmatpush1.msra.mxu0 0.0
    %353 = vmatprep.subr.mxu0 0.0
    %354 = vmatpush1.msra.mxu0 0.0
    %355 = vmatprep.subr.mxu0 0.0
    %356 = vmatpush1.msra.mxu0 0.0
    %357 = vmatprep.mubr.f32.mxu0 0.0
    %358 = vmatmul.mubr.f32.gmra.mrb[0].mxu0 %v287
    %v359 = vpop.f32.mrb[0].mxu0
    %v360 = vadd.f32 %v283, %v359
    %v361 = vpop.f32.mrb[0].mxu0
    %362 = vdwg.mxu0
    %v363 = vsel %vm149, %v360, 0.0
    %364 = vadd.xlane.f32.xlu0 %v363
    %v365 = vpop.xlane.xlu0 %364
    %v366 = vmul.f32 %v365, %v237
    %v367 = vsub.f32 %v360, %v366
    %v368 = vmul.f32 %v367, %v367
    %v369 = vsel %vm149, %v368, 0.0
    %370 = vadd.xlane.f32.xlu0 %v369
    %v371 = vpop.xlane.xlu0 %370
    %v372 = vmul.f32 %v371, %v237
    %v373 = vadd.f32 %v372, 1e-05
    %v374 = vrsqrt.pop %v373
    %v375 = vmul.f32 %v367, %v374
    %377 = vset.pattern.permute.xlu0 0
    %378 = vperm.xlu0 %377, %v263
    %v379 = vpop.permute.xlu0 %378
    %v381 = vmul.f32 %v375, %v379
    %383 = vset.pattern.permute.xlu0 0
    %384 = vperm.xlu0 %383, %v264
    %v385 = vpop.permute.xlu0 %384
    %v387 = vadd.f32 %v381, %v385
    %v388 = vmax.f32 %v387, 0.0
    %v389 = vld [vmem:[%s19] sm:$0xf]
    %v390 = vld [vmem:[%s21] sm:$0xf]
    %v391 = vld [vmem:[%s23] sm:$0xf]
    %v392 = vld [vmem:[%s25] sm:$0xf]
    %393 = vrot.lane.b32.xlu0 %v388, 1
    %v394 = vpop.permute.xlu0 %393
    %v395 = vsel %vm130, 0.0, %v394
    %396 = vrot.lane.b32.xlu0 %v388, 127
    %v397 = vpop.permute.xlu0 %396
    %v398 = vsel %vm134, 0.0, %v397
    %v400 = vrot.slane %v388, 6
    %v403 = vrot.slane %v398, 4
    %v405 = vsel %vm149, %v395, %v400
    %v406 = vsel %vm278, %v405, %v403
    %408 = vset.pattern.permute.xlu0 0
    %409 = vperm.xlu0 %408, %v390
    %v410 = vpop.permute.xlu0 %409
    %v413 = vsel %vm285, %v389, 0
    %v416 = vsel %vm289, %v406, 0
    %418 = vmatprep.subr.mxu0 0.0
    %419 = vmatpush1.msra.mxu0 %v416
    %420 = vmatprep.subr.mxu0 0.0
    %421 = vmatpush1.msra.mxu0 0.0
    %422 = vmatprep.subr.mxu0 0.0
    %423 = vmatpush1.msra.mxu0 0.0
    %424 = vmatprep.subr.mxu0 0.0
    %425 = vmatpush1.msra.mxu0 0.0
    %426 = vmatprep.subr.mxu0 0.0
    %427 = vmatpush1.msra.mxu0 0.0
    %428 = vmatprep.subr.mxu0 0.0
    %429 = vmatpush1.msra.mxu0 0.0
    %430 = vmatprep.subr.mxu0 0.0
    %431 = vmatpush1.msra.mxu0 0.0
    %432 = vmatprep.subr.mxu0 0.0
    %433 = vmatpush1.msra.mxu0 0.0
    %434 = vmatprep.subr.mxu0 0.0
    %435 = vmatpush1.msra.mxu0 0.0
    %436 = vmatprep.subr.mxu0 0.0
    %437 = vmatpush1.msra.mxu0 0.0
    %438 = vmatprep.subr.mxu0 0.0
    %439 = vmatpush1.msra.mxu0 0.0
    %440 = vmatprep.subr.mxu0 0.0
    %441 = vmatpush1.msra.mxu0 0.0
    %442 = vmatprep.subr.mxu0 0.0
    %443 = vmatpush1.msra.mxu0 0.0
    %444 = vmatprep.subr.mxu0 0.0
    %445 = vmatpush1.msra.mxu0 0.0
    %446 = vmatprep.subr.mxu0 0.0
    %447 = vmatpush1.msra.mxu0 0.0
    %448 = vmatprep.subr.mxu0 0.0
    %449 = vmatpush1.msra.mxu0 0.0
    %450 = vmatprep.subr.mxu0 0.0
    %451 = vmatpush1.msra.mxu0 0.0
    %452 = vmatprep.subr.mxu0 0.0
    %453 = vmatpush1.msra.mxu0 0.0
    %454 = vmatprep.subr.mxu0 0.0
    %455 = vmatpush1.msra.mxu0 0.0
    %456 = vmatprep.subr.mxu0 0.0
    %457 = vmatpush1.msra.mxu0 0.0
    %458 = vmatprep.subr.mxu0 0.0
    %459 = vmatpush1.msra.mxu0 0.0
    %460 = vmatprep.subr.mxu0 0.0
    %461 = vmatpush1.msra.mxu0 0.0
    %462 = vmatprep.subr.mxu0 0.0
    %463 = vmatpush1.msra.mxu0 0.0
    %464 = vmatprep.subr.mxu0 0.0
    %465 = vmatpush1.msra.mxu0 0.0
    %466 = vmatprep.subr.mxu0 0.0
    %467 = vmatpush1.msra.mxu0 0.0
    %468 = vmatprep.subr.mxu0 0.0
    %469 = vmatpush1.msra.mxu0 0.0
    %470 = vmatprep.subr.mxu0 0.0
    %471 = vmatpush1.msra.mxu0 0.0
    %472 = vmatprep.subr.mxu0 0.0
    %473 = vmatpush1.msra.mxu0 0.0
    %474 = vmatprep.subr.mxu0 0.0
    %475 = vmatpush1.msra.mxu0 0.0
    %476 = vmatprep.subr.mxu0 0.0
    %477 = vmatpush1.msra.mxu0 0.0
    %478 = vmatprep.subr.mxu0 0.0
    %479 = vmatpush1.msra.mxu0 0.0
    %480 = vmatprep.subr.mxu0 0.0
    %481 = vmatpush1.msra.mxu0 0.0
    %482 = vmatprep.mubr.f32.mxu0 0.0
    %483 = vmatmul.mubr.f32.gmra.mrb[0].mxu0 %v413
    %v484 = vpop.f32.mrb[0].mxu0
    %v485 = vadd.f32 %v410, %v484
    %v486 = vpop.f32.mrb[0].mxu0
    %487 = vdwg.mxu0
    %v488 = vsel %vm278, %v485, 0.0
    %489 = vadd.xlane.f32.xlu0 %v488
    %v490 = vpop.xlane.xlu0 %489
    %v491 = vmul.f32 %v490, %v237
    %v492 = vsub.f32 %v485, %v491
    %v493 = vmul.f32 %v492, %v492
    %v494 = vsel %vm278, %v493, 0.0
    %495 = vadd.xlane.f32.xlu0 %v494
    %v496 = vpop.xlane.xlu0 %495
    %v497 = vmul.f32 %v496, %v237
    %v498 = vadd.f32 %v497, 1e-05
    %v499 = vrsqrt.pop %v498
    %v500 = vmul.f32 %v492, %v499
    %502 = vset.pattern.permute.xlu0 0
    %503 = vperm.xlu0 %502, %v391
    %v504 = vpop.permute.xlu0 %503
    %v506 = vmul.f32 %v500, %v504
    %508 = vset.pattern.permute.xlu0 0
    %509 = vperm.xlu0 %508, %v392
    %v510 = vpop.permute.xlu0 %509
    %v512 = vadd.f32 %v506, %v510
    %v513 = vmax.f32 %v512, 0.0
    %v514 = vld [vmem:[%s27] sm:$0xf]
    %v515 = vld [vmem:[%s29] sm:$0xf]
    %v516 = vld [vmem:[%s31] sm:$0xf]
    %v517 = vld [vmem:[%s33] sm:$0xf]
    %518 = vrot.lane.b32.xlu0 %v513, 1
    %v519 = vpop.permute.xlu0 %518
    %v520 = vsel %vm130, 0.0, %v519
    %521 = vrot.lane.b32.xlu0 %v513, 127
    %v522 = vpop.permute.xlu0 %521
    %v523 = vsel %vm134, 0.0, %v522
    %v525 = vrot.slane %v513, 4
    %v527 = vsel %vm278, %v520, %v525
    %529 = vset.pattern.permute.xlu0 0
    %530 = vperm.xlu0 %529, %v515
    %v531 = vpop.permute.xlu0 %530
    %vm533 = vcmask 97280
    %v535 = vsel %vm533, %v514, 0
    %v538 = vsel %vm278, %v523, 0
    %540 = vmatprep.subr.mxu0 0.0
    %541 = vmatpush1.msra.mxu0 %v527
    %542 = vmatprep.subr.mxu0 0.0
    %543 = vmatpush1.msra.mxu0 %v538
    %544 = vmatprep.subr.mxu0 0.0
    %545 = vmatpush1.msra.mxu0 0.0
    %546 = vmatprep.subr.mxu0 0.0
    %547 = vmatpush1.msra.mxu0 0.0
    %548 = vmatprep.subr.mxu0 0.0
    %549 = vmatpush1.msra.mxu0 0.0
    %550 = vmatprep.subr.mxu0 0.0
    %551 = vmatpush1.msra.mxu0 0.0
    %552 = vmatprep.subr.mxu0 0.0
    %553 = vmatpush1.msra.mxu0 0.0
    %554 = vmatprep.subr.mxu0 0.0
    %555 = vmatpush1.msra.mxu0 0.0
    %556 = vmatprep.subr.mxu0 0.0
    %557 = vmatpush1.msra.mxu0 0.0
    %558 = vmatprep.subr.mxu0 0.0
    %559 = vmatpush1.msra.mxu0 0.0
    %560 = vmatprep.subr.mxu0 0.0
    %561 = vmatpush1.msra.mxu0 0.0
    %562 = vmatprep.subr.mxu0 0.0
    %563 = vmatpush1.msra.mxu0 0.0
    %564 = vmatprep.subr.mxu0 0.0
    %565 = vmatpush1.msra.mxu0 0.0
    %566 = vmatprep.subr.mxu0 0.0
    %567 = vmatpush1.msra.mxu0 0.0
    %568 = vmatprep.subr.mxu0 0.0
    %569 = vmatpush1.msra.mxu0 0.0
    %570 = vmatprep.subr.mxu0 0.0
    %571 = vmatpush1.msra.mxu0 0.0
    %572 = vmatprep.subr.mxu0 0.0
    %573 = vmatpush1.msra.mxu0 0.0
    %574 = vmatprep.subr.mxu0 0.0
    %575 = vmatpush1.msra.mxu0 0.0
    %576 = vmatprep.subr.mxu0 0.0
    %577 = vmatpush1.msra.mxu0 0.0
    %578 = vmatprep.subr.mxu0 0.0
    %579 = vmatpush1.msra.mxu0 0.0
    %580 = vmatprep.subr.mxu0 0.0
    %581 = vmatpush1.msra.mxu0 0.0
    %582 = vmatprep.subr.mxu0 0.0
    %583 = vmatpush1.msra.mxu0 0.0
    %584 = vmatprep.subr.mxu0 0.0
    %585 = vmatpush1.msra.mxu0 0.0
    %586 = vmatprep.subr.mxu0 0.0
    %587 = vmatpush1.msra.mxu0 0.0
    %588 = vmatprep.subr.mxu0 0.0
    %589 = vmatpush1.msra.mxu0 0.0
    %590 = vmatprep.subr.mxu0 0.0
    %591 = vmatpush1.msra.mxu0 0.0
    %592 = vmatprep.subr.mxu0 0.0
    %593 = vmatpush1.msra.mxu0 0.0
    %594 = vmatprep.subr.mxu0 0.0
    %595 = vmatpush1.msra.mxu0 0.0
    %596 = vmatprep.subr.mxu0 0.0
    %597 = vmatpush1.msra.mxu0 0.0
    %598 = vmatprep.subr.mxu0 0.0
    %599 = vmatpush1.msra.mxu0 0.0
    %600 = vmatprep.subr.mxu0 0.0
    %601 = vmatpush1.msra.mxu0 0.0
    %602 = vmatprep.subr.mxu0 0.0
    %603 = vmatpush1.msra.mxu0 0.0
    %604 = vmatprep.mubr.f32.mxu0 0.0
    %605 = vmatmul.mubr.f32.gmra.mrb[0].mxu0 %v535
    %v606 = vpop.f32.mrb[0].mxu0
    %v607 = vadd.f32 %v531, %v606
    %v608 = vpop.f32.mrb[0].mxu0
    %609 = vdwg.mxu0
    %v610 = vsel %vm278, %v607, 0.0
    %611 = vadd.xlane.f32.xlu0 %v610
    %v612 = vpop.xlane.xlu0 %611
    %v613 = vmul.f32 %v612, %v237
    %v614 = vsub.f32 %v607, %v613
    %v615 = vmul.f32 %v614, %v614
    %v616 = vsel %vm278, %v615, 0.0
    %617 = vadd.xlane.f32.xlu0 %v616
    %v618 = vpop.xlane.xlu0 %617
    %v619 = vmul.f32 %v618, %v237
    %v620 = vadd.f32 %v619, 1e-05
    %v621 = vrsqrt.pop %v620
    %v622 = vmul.f32 %v614, %v621
    %624 = vset.pattern.permute.xlu0 0
    %625 = vperm.xlu0 %624, %v516
    %v626 = vpop.permute.xlu0 %625
    %v628 = vmul.f32 %v622, %v626
    %630 = vset.pattern.permute.xlu0 0
    %631 = vperm.xlu0 %630, %v517
    %v632 = vpop.permute.xlu0 %631
    %v634 = vadd.f32 %v628, %v632
    %v635 = vmax.f32 %v634, 0.0
    %v636 = vld [vmem:[%s35] sm:$0xf]
    %v637 = vld [vmem:[%s37] sm:$0xf]
    %v638 = vld [vmem:[%s39] sm:$0xf]
    %v639 = vld [vmem:[%s41] sm:$0xf]
    %640 = vrot.lane.b32.xlu0 %v635, 1
    %v641 = vpop.permute.xlu0 %640
    %v642 = vsel %vm130, 0.0, %v641
    %643 = vrot.lane.b32.xlu0 %v635, 127
    %v644 = vpop.permute.xlu0 %643
    %v645 = vsel %vm134, 0.0, %v644
    %v647 = vrot.slane %v635, 4
    %v649 = vsel %vm278, %v642, %v647
    %651 = vset.pattern.permute.xlu0 0
    %652 = vperm.xlu0 %651, %v637
    %v653 = vpop.permute.xlu0 %652
    %v656 = vsel %vm533, %v636, 0
    %v659 = vsel %vm278, %v645, 0
    %661 = vmatprep.subr.mxu0 0.0
    %662 = vmatpush1.msra.mxu0 %v649
    %663 = vmatprep.subr.mxu0 0.0
    %664 = vmatpush1.msra.mxu0 %v659
    %665 = vmatprep.subr.mxu0 0.0
    %666 = vmatpush1.msra.mxu0 0.0
    %667 = vmatprep.subr.mxu0 0.0
    %668 = vmatpush1.msra.mxu0 0.0
    %669 = vmatprep.subr.mxu0 0.0
    %670 = vmatpush1.msra.mxu0 0.0
    %671 = vmatprep.subr.mxu0 0.0
    %672 = vmatpush1.msra.mxu0 0.0
    %673 = vmatprep.subr.mxu0 0.0
    %674 = vmatpush1.msra.mxu0 0.0
    %675 = vmatprep.subr.mxu0 0.0
    %676 = vmatpush1.msra.mxu0 0.0
    %677 = vmatprep.subr.mxu0 0.0
    %678 = vmatpush1.msra.mxu0 0.0
    %679 = vmatprep.subr.mxu0 0.0
    %680 = vmatpush1.msra.mxu0 0.0
    %681 = vmatprep.subr.mxu0 0.0
    %682 = vmatpush1.msra.mxu0 0.0
    %683 = vmatprep.subr.mxu0 0.0
    %684 = vmatpush1.msra.mxu0 0.0
    %685 = vmatprep.subr.mxu0 0.0
    %686 = vmatpush1.msra.mxu0 0.0
    %687 = vmatprep.subr.mxu0 0.0
    %688 = vmatpush1.msra.mxu0 0.0
    %689 = vmatprep.subr.mxu0 0.0
    %690 = vmatpush1.msra.mxu0 0.0
    %691 = vmatprep.subr.mxu0 0.0
    %692 = vmatpush1.msra.mxu0 0.0
    %693 = vmatprep.subr.mxu0 0.0
    %694 = vmatpush1.msra.mxu0 0.0
    %695 = vmatprep.subr.mxu0 0.0
    %696 = vmatpush1.msra.mxu0 0.0
    %697 = vmatprep.subr.mxu0 0.0
    %698 = vmatpush1.msra.mxu0 0.0
    %699 = vmatprep.subr.mxu0 0.0
    %700 = vmatpush1.msra.mxu0 0.0
    %701 = vmatprep.subr.mxu0 0.0
    %702 = vmatpush1.msra.mxu0 0.0
    %703 = vmatprep.subr.mxu0 0.0
    %704 = vmatpush1.msra.mxu0 0.0
    %705 = vmatprep.subr.mxu0 0.0
    %706 = vmatpush1.msra.mxu0 0.0
    %707 = vmatprep.subr.mxu0 0.0
    %708 = vmatpush1.msra.mxu0 0.0
    %709 = vmatprep.subr.mxu0 0.0
    %710 = vmatpush1.msra.mxu0 0.0
    %711 = vmatprep.subr.mxu0 0.0
    %712 = vmatpush1.msra.mxu0 0.0
    %713 = vmatprep.subr.mxu0 0.0
    %714 = vmatpush1.msra.mxu0 0.0
    %715 = vmatprep.subr.mxu0 0.0
    %716 = vmatpush1.msra.mxu0 0.0
    %717 = vmatprep.subr.mxu0 0.0
    %718 = vmatpush1.msra.mxu0 0.0
    %719 = vmatprep.subr.mxu0 0.0
    %720 = vmatpush1.msra.mxu0 0.0
    %721 = vmatprep.subr.mxu0 0.0
    %722 = vmatpush1.msra.mxu0 0.0
    %723 = vmatprep.subr.mxu0 0.0
    %724 = vmatpush1.msra.mxu0 0.0
    %725 = vmatprep.mubr.f32.mxu0 0.0
    %726 = vmatmul.mubr.f32.gmra.mrb[0].mxu0 %v656
    %v727 = vpop.f32.mrb[0].mxu0
    %v728 = vadd.f32 %v653, %v727
    %v729 = vpop.f32.mrb[0].mxu0
    %730 = vdwg.mxu0
    %v731 = vsel %vm278, %v728, 0.0
    %732 = vadd.xlane.f32.xlu0 %v731
    %v733 = vpop.xlane.xlu0 %732
    %v734 = vmul.f32 %v733, %v237
    %v735 = vsub.f32 %v728, %v734
    %v736 = vmul.f32 %v735, %v735
    %v737 = vsel %vm278, %v736, 0.0
    %738 = vadd.xlane.f32.xlu0 %v737
    %v739 = vpop.xlane.xlu0 %738
    %v740 = vmul.f32 %v739, %v237
    %v741 = vadd.f32 %v740, 1e-05
    %v742 = vrsqrt.pop %v741
    %v743 = vmul.f32 %v735, %v742
    %745 = vset.pattern.permute.xlu0 0
    %746 = vperm.xlu0 %745, %v638
    %v747 = vpop.permute.xlu0 %746
    %v749 = vmul.f32 %v743, %v747
    %751 = vset.pattern.permute.xlu0 0
    %752 = vperm.xlu0 %751, %v639
    %v753 = vpop.permute.xlu0 %752
    %v755 = vadd.f32 %v749, %v753
    %v756 = vmax.f32 %v755, 0.0
    %v757 = vld [vmem:[%s43] sm:$0xff]
    %v758 = vld [vmem:[%s45] sm:$0xff]
    %v759 = vld [vmem:[%s47] sm:$0xff]
    %v760 = vld [vmem:[%s49] sm:$0xff]
    %761 = vrot.lane.b32.xlu0 %v756, 1
    %v762 = vpop.permute.xlu0 %761
    %v763 = vsel %vm130, 0.0, %v762
    %764 = vrot.lane.b32.xlu0 %v756, 127
    %v765 = vpop.permute.xlu0 %764
    %v766 = vsel %vm134, 0.0, %v765
    %v768 = vrot.slane %v756, 4
    %v770 = vsel %vm278, %v763, %v768
    %772 = vset.pattern.permute.xlu0 0
    %773 = vperm.xlu0 %772, %v758
    %v774 = vpop.permute.xlu0 %773
    %v777 = vsel %vm533, %v757, 0
    %v780 = vsel %vm278, %v766, 0
    %782 = vmatprep.subr.mxu0 0.0
    %783 = vmatpush1.msra.mxu0 %v770
    %784 = vmatprep.subr.mxu0 0.0
    %785 = vmatpush1.msra.mxu0 %v780
    %786 = vmatprep.subr.mxu0 0.0
    %787 = vmatpush1.msra.mxu0 0.0
    %788 = vmatprep.subr.mxu0 0.0
    %789 = vmatpush1.msra.mxu0 0.0
    %790 = vmatprep.subr.mxu0 0.0
    %791 = vmatpush1.msra.mxu0 0.0
    %792 = vmatprep.subr.mxu0 0.0
    %793 = vmatpush1.msra.mxu0 0.0
    %794 = vmatprep.subr.mxu0 0.0
    %795 = vmatpush1.msra.mxu0 0.0
    %796 = vmatprep.subr.mxu0 0.0
    %797 = vmatpush1.msra.mxu0 0.0
    %798 = vmatprep.subr.mxu0 0.0
    %799 = vmatpush1.msra.mxu0 0.0
    %800 = vmatprep.subr.mxu0 0.0
    %801 = vmatpush1.msra.mxu0 0.0
    %802 = vmatprep.subr.mxu0 0.0
    %803 = vmatpush1.msra.mxu0 0.0
    %804 = vmatprep.subr.mxu0 0.0
    %805 = vmatpush1.msra.mxu0 0.0
    %806 = vmatprep.subr.mxu0 0.0
    %807 = vmatpush1.msra.mxu0 0.0
    %808 = vmatprep.subr.mxu0 0.0
    %809 = vmatpush1.msra.mxu0 0.0
    %810 = vmatprep.subr.mxu0 0.0
    %811 = vmatpush1.msra.mxu0 0.0
    %812 = vmatprep.subr.mxu0 0.0
    %813 = vmatpush1.msra.mxu0 0.0
    %814 = vmatprep.subr.mxu0 0.0
    %815 = vmatpush1.msra.mxu0 0.0
    %816 = vmatprep.subr.mxu0 0.0
    %817 = vmatpush1.msra.mxu0 0.0
    %818 = vmatprep.subr.mxu0 0.0
    %819 = vmatpush1.msra.mxu0 0.0
    %820 = vmatprep.subr.mxu0 0.0
    %821 = vmatpush1.msra.mxu0 0.0
    %822 = vmatprep.subr.mxu0 0.0
    %823 = vmatpush1.msra.mxu0 0.0
    %824 = vmatprep.subr.mxu0 0.0
    %825 = vmatpush1.msra.mxu0 0.0
    %826 = vmatprep.subr.mxu0 0.0
    %827 = vmatpush1.msra.mxu0 0.0
    %828 = vmatprep.subr.mxu0 0.0
    %829 = vmatpush1.msra.mxu0 0.0
    %830 = vmatprep.subr.mxu0 0.0
    %831 = vmatpush1.msra.mxu0 0.0
    %832 = vmatprep.subr.mxu0 0.0
    %833 = vmatpush1.msra.mxu0 0.0
    %834 = vmatprep.subr.mxu0 0.0
    %835 = vmatpush1.msra.mxu0 0.0
    %836 = vmatprep.subr.mxu0 0.0
    %837 = vmatpush1.msra.mxu0 0.0
    %838 = vmatprep.subr.mxu0 0.0
    %839 = vmatpush1.msra.mxu0 0.0
    %840 = vmatprep.subr.mxu0 0.0
    %841 = vmatpush1.msra.mxu0 0.0
    %842 = vmatprep.subr.mxu0 0.0
    %843 = vmatpush1.msra.mxu0 0.0
    %844 = vmatprep.subr.mxu0 0.0
    %845 = vmatpush1.msra.mxu0 0.0
    %846 = vmatprep.mubr.f32.mxu0 0.0
    %847 = vmatmul.mubr.f32.gmra.mrb[0].mxu0 %v777
    %v848 = vpop.f32.mrb[0].mxu0
    %v849 = vadd.f32 %v774, %v848
    %v850 = vpop.f32.mrb[0].mxu0
    %851 = vdwg.mxu0
    %852 = vadd.xlane.f32.xlu0 %v849
    %v853 = vpop.xlane.xlu0 %852
    %v854 = vmul.f32 %v853, %v237
    %v855 = vsub.f32 %v849, %v854
    %v856 = vmul.f32 %v855, %v855
    %857 = vadd.xlane.f32.xlu0 %v856
    %v858 = vpop.xlane.xlu0 %857
    %v859 = vmul.f32 %v858, %v237
    %v860 = vadd.f32 %v859, 1e-05
    %v861 = vrsqrt.pop %v860
    %v862 = vmul.f32 %v855, %v861
    %864 = vset.pattern.permute.xlu0 0
    %865 = vperm.xlu0 %864, %v759
    %v866 = vpop.permute.xlu0 %865
    %v868 = vmul.f32 %v862, %v866
    %870 = vset.pattern.permute.xlu0 0
    %871 = vperm.xlu0 %870, %v760
    %v872 = vpop.permute.xlu0 %871
    %v874 = vadd.f32 %v868, %v872
    %v875 = vmax.f32 %v874, 0.0
    %v876 = vld [vmem:[%s51] sm:$0xff]
    %v877 = vld [vmem:[%s53] sm:$0xff]
    %v878 = vld [vmem:[%s55] sm:$0xff]
    %v879 = vld [vmem:[%s57] sm:$0xff]
    %880 = vrot.lane.b32.xlu0 %v875, 1
    %v881 = vpop.permute.xlu0 %880
    %v882 = vsel %vm130, 0.0, %v881
    %883 = vrot.lane.b32.xlu0 %v875, 127
    %v884 = vpop.permute.xlu0 %883
    %v885 = vsel %vm134, 0.0, %v884
    %887 = vset.pattern.permute.xlu0 0
    %888 = vperm.xlu0 %887, %v877
    %v889 = vpop.permute.xlu0 %888
    %vm891 = vcmask 195584
    %v893 = vsel %vm891, %v876, 0
    %895 = vmatprep.subr.mxu0 0.0
    %896 = vmatpush1.msra.mxu0 %v882
    %897 = vmatprep.subr.mxu0 0.0
    %898 = vmatpush1.msra.mxu0 %v875
    %899 = vmatprep.subr.mxu0 0.0
    %900 = vmatpush1.msra.mxu0 %v885
    %901 = vmatprep.subr.mxu0 0.0
    %902 = vmatpush1.msra.mxu0 0.0
    %903 = vmatprep.subr.mxu0 0.0
    %904 = vmatpush1.msra.mxu0 0.0
    %905 = vmatprep.subr.mxu0 0.0
    %906 = vmatpush1.msra.mxu0 0.0
    %907 = vmatprep.subr.mxu0 0.0
    %908 = vmatpush1.msra.mxu0 0.0
    %909 = vmatprep.subr.mxu0 0.0
    %910 = vmatpush1.msra.mxu0 0.0
    %911 = vmatprep.subr.mxu0 0.0
    %912 = vmatpush1.msra.mxu0 0.0
    %913 = vmatprep.subr.mxu0 0.0
    %914 = vmatpush1.msra.mxu0 0.0
    %915 = vmatprep.subr.mxu0 0.0
    %916 = vmatpush1.msra.mxu0 0.0
    %917 = vmatprep.subr.mxu0 0.0
    %918 = vmatpush1.msra.mxu0 0.0
    %919 = vmatprep.subr.mxu0 0.0
    %920 = vmatpush1.msra.mxu0 0.0
    %921 = vmatprep.subr.mxu0 0.0
    %922 = vmatpush1.msra.mxu0 0.0
    %923 = vmatprep.subr.mxu0 0.0
    %924 = vmatpush1.msra.mxu0 0.0
    %925 = vmatprep.subr.mxu0 0.0
    %926 = vmatpush1.msra.mxu0 0.0
    %927 = vmatprep.subr.mxu0 0.0
    %928 = vmatpush1.msra.mxu0 0.0
    %929 = vmatprep.subr.mxu0 0.0
    %930 = vmatpush1.msra.mxu0 0.0
    %931 = vmatprep.subr.mxu0 0.0
    %932 = vmatpush1.msra.mxu0 0.0
    %933 = vmatprep.subr.mxu0 0.0
    %934 = vmatpush1.msra.mxu0 0.0
    %935 = vmatprep.subr.mxu0 0.0
    %936 = vmatpush1.msra.mxu0 0.0
    %937 = vmatprep.subr.mxu0 0.0
    %938 = vmatpush1.msra.mxu0 0.0
    %939 = vmatprep.subr.mxu0 0.0
    %940 = vmatpush1.msra.mxu0 0.0
    %941 = vmatprep.subr.mxu0 0.0
    %942 = vmatpush1.msra.mxu0 0.0
    %943 = vmatprep.subr.mxu0 0.0
    %944 = vmatpush1.msra.mxu0 0.0
    %945 = vmatprep.subr.mxu0 0.0
    %946 = vmatpush1.msra.mxu0 0.0
    %947 = vmatprep.subr.mxu0 0.0
    %948 = vmatpush1.msra.mxu0 0.0
    %949 = vmatprep.subr.mxu0 0.0
    %950 = vmatpush1.msra.mxu0 0.0
    %951 = vmatprep.subr.mxu0 0.0
    %952 = vmatpush1.msra.mxu0 0.0
    %953 = vmatprep.subr.mxu0 0.0
    %954 = vmatpush1.msra.mxu0 0.0
    %955 = vmatprep.subr.mxu0 0.0
    %956 = vmatpush1.msra.mxu0 0.0
    %957 = vmatprep.subr.mxu0 0.0
    %958 = vmatpush1.msra.mxu0 0.0
    %959 = vmatprep.mubr.f32.mxu0 0.0
    %960 = vmatmul.mubr.f32.gmra.mrb[0].mxu0 %v893
    %v961 = vpop.f32.mrb[0].mxu0
    %v962 = vadd.f32 %v889, %v961
    %v963 = vpop.f32.mrb[0].mxu0
    %964 = vdwg.mxu0
    %965 = vadd.xlane.f32.xlu0 %v962
    %v966 = vpop.xlane.xlu0 %965
    %v967 = vmul.f32 %v966, %v237
    %v968 = vsub.f32 %v962, %v967
    %v969 = vmul.f32 %v968, %v968
    %970 = vadd.xlane.f32.xlu0 %v969
    %v971 = vpop.xlane.xlu0 %970
    %v972 = vmul.f32 %v971, %v237
    %v973 = vadd.f32 %v972, 1e-05
    %v974 = vrsqrt.pop %v973
    %v975 = vmul.f32 %v968, %v974
    %977 = vset.pattern.permute.xlu0 0
    %978 = vperm.xlu0 %977, %v878
    %v979 = vpop.permute.xlu0 %978
    %v981 = vmul.f32 %v975, %v979
    %983 = vset.pattern.permute.xlu0 0
    %984 = vperm.xlu0 %983, %v879
    %v985 = vpop.permute.xlu0 %984
    %v987 = vadd.f32 %v981, %v985
    %v988 = vxor.u32 %v987, 2147483648
    %v989 = vmul.f32 %v988, 1.442695
    %v990 = vpow.pop %v989
    %v991 = vadd.f32 %v990, 1.0
    %v992 = vrcp.pop %v991
    %v993 = vmul.f32 1.0, %v992
    %994 = vst [vmem:[#allocation2] sm:$0xff] %v993
    // Predicated region
    $region118: #{cnn_nodes_forward.1} parent=1 // pred_check
      _
    $region119: #{cnn_nodes_forward.1} parent=1 // pred_check_branch
      %996 = sbr.rel (0) target = $region121
    $region120: #{cnn_nodes_forward.1} parent=1 // pred_region
      %s998 = ssub.s32 128, 128
      %999 = vsyncadd [#allocation3], %s998
      %s1001 = sshll.u32 [#allocation2], 4
      %s1002 = int_to_ptr.vmem [resolvable:$true] %s1001
      %1004 = dma.vmem_to_hbm [thread:$0]  %s1002, 128, %s59, [#allocation3]
    $region121: #{cnn_nodes_forward.1} parent=1 // pred_fallthru
      _
    // Predicated region
    $region122: #{cnn_nodes_forward.1} parent=1 // pred_check
      _
    $region123: #{cnn_nodes_forward.1} parent=1 // pred_check_branch
      %1006 = sbr.rel (0) target = $region125
    $region124: #{cnn_nodes_forward.1} parent=1 // pred_region
      %1007 = dma.done [#allocation3], 128
    $region125: #{cnn_nodes_forward.1} parent=1 // pred_fallthru
      _
    %1008 = vsyncpa [#allocation3], 1

</llo_original>
